<compile_context>
chip_gen: v6e
topology: v6e:2x2x1
jax: 0.10.0
libtpu: 0.0.40
codegen_flags: <defaults>
</compile_context>

<pallas_src>
import math
import jax
import jax.numpy as jnp
from jax.experimental import pallas as pl
from jax.experimental.pallas import tpu as pltpu


def _xavier_uniform(key, fan_out, fan_in, dtype=jnp.float32):
    """torch.nn.init.xavier_uniform_ for a (fan_out, fan_in) Linear weight."""
    limit = math.sqrt(6.0 / (fan_in + fan_out))
    return jax.random.uniform(key, (fan_out, fan_in), dtype=dtype,
                              minval=-limit, maxval=limit)


def _round_up(n, m):
    return ((n + m - 1) // m) * m


def mlp_kernel(x_ref, w1_ref, b1_ref, w2_ref, b2_ref, w3_ref, b3_ref, o_ref):
    # Batch-major: every row of the tile is an independent board state, so the
    # (possibly garbage) tail rows of the last block only affect masked-out outputs.
    x = x_ref[...]                                                      # (tb, 9)
    h1 = jnp.dot(x, w1_ref[...],
                 preferred_element_type=jnp.float32,
                 precision=jax.lax.Precision.HIGHEST)                   # (tb, 128)
    h1 = jnp.maximum(h1 + b1_ref[...], 0.0)                             # ReLU
    h2 = jnp.dot(h1, w2_ref[...],
                 preferred_element_type=jnp.float32,
                 precision=jax.lax.Precision.HIGHEST)                   # (tb, 64)
    h2 = jnp.maximum(h2 + b2_ref[...], 0.0)                             # ReLU
    q = jnp.dot(h2, w3_ref[...],
                preferred_element_type=jnp.float32,
                precision=jax.lax.Precision.HIGHEST)                    # (tb, 9)
    o_ref[...] = (q + b3_ref[...]).astype(o_ref.dtype)


def _pick_batch_tile(B, tb_max=4096):
    """Sublane-aligned batch tile: big enough to amortize per-step overhead, small
    enough to give >= 2 grid steps (v7x megacore) whenever B allows, never larger
    than the array (so tiny batches use a single exact-size block)."""
    if B <= 8:
        return B                                   # single block == full array
    target = max(pl.cdiv(B, 2), 128)               # >= 2 steps when B >= 256
    tb = min(tb_max, _round_up(target, 128))
    tb = min(tb, (B // 8) * 8)                     # multiple of 8, never exceeds B
    return tb


def tictactoe_net_forward(x, params, *, tb=None):
    """x: (B, 9) float32.  params hold pre-transposed (in, out) weights, (1, out) biases."""
    B = x.shape[0]
    w1t, b1 = params["w1t"], params["b1"]   # (9, 128),  (1, 128)
    w2t, b2 = params["w2t"], params["b2"]   # (128, 64), (1, 64)
    w3t, b3 = params["w3t"], params["b3"]   # (64, 9),   (1, 9)

    if tb is None:
        tb = _pick_batch_tile(B)
    n_blk = pl.cdiv(B, tb)                  # ragged tail handled by Pallas masking

    const = lambda shape: pl.BlockSpec(shape, lambda i: (0, 0))  # VMEM-resident

    flops = 2 * B * (9 * 128 + 128 * 64 + 64 * 9)
    bytes_accessed = 4 * (B * 9 * 2                 # x in + q out
                          + 9 * 128 + 128           # w1t, b1
                          + 128 * 64 + 64           # w2t, b2
                          + 64 * 9 + 9)             # w3t, b3

    return pl.pallas_call(
        mlp_kernel,
        out_shape=jax.ShapeDtypeStruct((B, 9), x.dtype),
        grid=(n_blk,),
        in_specs=[
            pl.BlockSpec((tb, 9), lambda i: (i, 0)),   # x tile straight from (B, 9)
            const(w1t.shape), const(b1.shape),
            const(w2t.shape), const(b2.shape),
            const(w3t.shape), const(b3.shape),
        ],
        out_specs=pl.BlockSpec((tb, 9), lambda i: (i, 0)),
        compiler_params=pltpu.CompilerParams(
            dimension_semantics=("parallel",),         # megacore split on v7x
        ),
        cost_estimate=pl.CostEstimate(flops=flops, transcendentals=0,
                                      bytes_accessed=bytes_accessed),
    )(x, w1t, b1, w2t, b2, w3t, b3)


def init_params(key):
    k1, k2, k3 = jax.random.split(key, 3)
    # Generate in PyTorch's (out, in) orientation (matching xavier_uniform_), then store
    # pre-transposed once at init so the forward pass has no transposes anywhere.
    w1 = _xavier_uniform(k1, 128, 9)
    w2 = _xavier_uniform(k2, 64, 128)
    w3 = _xavier_uniform(k3, 9, 64)
    return {
        "w1t": w1.T, "b1": jnp.zeros((1, 128), jnp.float32),
        "w2t": w2.T, "b2": jnp.zeros((1, 64), jnp.float32),
        "w3t": w3.T, "b3": jnp.zeros((1, 9), jnp.float32),
    }


def _reference(x, params):
    """Pure-JAX reference, pinned to f32 matmul precision for exact parity."""
    dot = lambda a, b: jnp.dot(a, b, precision=jax.lax.Precision.HIGHEST)
    h1 = jnp.maximum(dot(x, params["w1t"]) + params["b1"], 0.0)
    h2 = jnp.maximum(dot(h1, params["w2t"]) + params["b2"], 0.0)
    return dot(h2, params["w3t"]) + params["b3"]


# TODO(synk): learn/get_action/update/test/serialize (Monte-Carlo self-play, epsilon-greedy
# action selection, optimizer step, pickling) are host-side RL control flow, not tensor
# ops -- only forward() is implemented as a Pallas kernel.

if __name__ == "__main__":
    key = jax.random.PRNGKey(0)
    kparam, kx = jax.random.split(key)
    params = init_params(kparam)

    # Batch of 8 tic-tac-toe board states (9 cells each), values in {-1, 0, 1}.
    B = 8
    x = jax.random.randint(kx, (B, 9), -1, 2).astype(jnp.float32)

    q = tictactoe_net_forward(x, params)
    q = jax.block_until_ready(q)

    ref = _reference(x, params)
    assert q.shape == (B, 9) and q.dtype == jnp.float32
    assert jnp.allclose(q, ref, atol=1e-4, rtol=1e-4)

    print("KERNEL_OK")
</pallas_src>

<mosaic_0001>
module attributes {stable_mosaic.version = 11 : i64} {
  func.func @mlp_kernel(%arg0: i32, %arg1: memref<8x9xf32, #tpu.memory_space<vmem>>, %arg2: memref<9x128xf32, #tpu.memory_space<vmem>>, %arg3: memref<1x128xf32, #tpu.memory_space<vmem>>, %arg4: memref<128x64xf32, #tpu.memory_space<vmem>>, %arg5: memref<1x64xf32, #tpu.memory_space<vmem>>, %arg6: memref<64x9xf32, #tpu.memory_space<vmem>>, %arg7: memref<1x9xf32, #tpu.memory_space<vmem>>, %arg8: memref<8x9xf32, #tpu.memory_space<vmem>>) attributes {dimension_semantics = [#tpu.dimension_semantics<parallel>], iteration_bounds = array<i64: 1>, scalar_prefetch = 0 : i64, scratch_operands = 0 : i64, tpu.core_type = #tpu.core_type<tc>, window_params = [{transform_indices = @transform_0, window_bounds = array<i64: 8, 9>}, {pipeline_mode = #tpu.pipeline_mode<synchronous>, transform_indices = @transform_1, window_bounds = array<i64: 9, 128>}, {pipeline_mode = #tpu.pipeline_mode<synchronous>, transform_indices = @transform_2, window_bounds = array<i64: 1, 128>}, {pipeline_mode = #tpu.pipeline_mode<synchronous>, transform_indices = @transform_3, window_bounds = array<i64: 128, 64>}, {pipeline_mode = #tpu.pipeline_mode<synchronous>, transform_indices = @transform_4, window_bounds = array<i64: 1, 64>}, {pipeline_mode = #tpu.pipeline_mode<synchronous>, transform_indices = @transform_5, window_bounds = array<i64: 64, 9>}, {pipeline_mode = #tpu.pipeline_mode<synchronous>, transform_indices = @transform_6, window_bounds = array<i64: 1, 9>}, {transform_indices = @transform_7, window_bounds = array<i64: 8, 9>}]} {
    %c0 = arith.constant 0 : index
    %c0_0 = arith.constant 0 : index
    %0 = vector.load %arg1[%c0, %c0_0] : memref<8x9xf32, #tpu.memory_space<vmem>>, vector<8x9xf32>
    %c0_1 = arith.constant 0 : index
    %c0_2 = arith.constant 0 : index
    %1 = vector.load %arg2[%c0_1, %c0_2] : memref<9x128xf32, #tpu.memory_space<vmem>>, vector<9x128xf32>
    %cst = arith.constant dense<0.000000e+00> : vector<8x128xf32>
    %2 = tpu.matmul %0, %1, %cst {dimension_numbers = #tpu.dot_dimension_numbers<[1], [0], [0], [1], [0, 0, 1, 1], [], []>, precision = #tpu.contract_precision<fp32>} : vector<8x9xf32>, vector<9x128xf32>, vector<8x128xf32> -> vector<8x128xf32>
    %c0_3 = arith.constant 0 : index
    %c0_4 = arith.constant 0 : index
    %3 = vector.load %arg3[%c0_3, %c0_4] : memref<1x128xf32, #tpu.memory_space<vmem>>, vector<1x128xf32>
    %4 = vector.broadcast %3 : vector<1x128xf32> to vector<8x128xf32>
    %5 = arith.addf %2, %4 : vector<8x128xf32>
    %cst_5 = arith.constant 0.000000e+00 : f32
    %6 = vector.broadcast %cst_5 : f32 to vector<8x128xf32>
    %7 = arith.maximumf %5, %6 : vector<8x128xf32>
    %c0_6 = arith.constant 0 : index
    %c0_7 = arith.constant 0 : index
    %8 = vector.load %arg4[%c0_6, %c0_7] : memref<128x64xf32, #tpu.memory_space<vmem>>, vector<128x64xf32>
    %cst_8 = arith.constant dense<0.000000e+00> : vector<8x64xf32>
    %9 = tpu.matmul %7, %8, %cst_8 {dimension_numbers = #tpu.dot_dimension_numbers<[1], [0], [0], [1], [0, 0, 1, 1], [], []>, precision = #tpu.contract_precision<fp32>} : vector<8x128xf32>, vector<128x64xf32>, vector<8x64xf32> -> vector<8x64xf32>
    %c0_9 = arith.constant 0 : index
    %c0_10 = arith.constant 0 : index
    %10 = vector.load %arg5[%c0_9, %c0_10] : memref<1x64xf32, #tpu.memory_space<vmem>>, vector<1x64xf32>
    %11 = vector.broadcast %10 : vector<1x64xf32> to vector<8x64xf32>
    %12 = arith.addf %9, %11 : vector<8x64xf32>
    %cst_11 = arith.constant 0.000000e+00 : f32
    %13 = vector.broadcast %cst_11 : f32 to vector<8x64xf32>
    %14 = arith.maximumf %12, %13 : vector<8x64xf32>
    %c0_12 = arith.constant 0 : index
    %c0_13 = arith.constant 0 : index
    %15 = vector.load %arg6[%c0_12, %c0_13] : memref<64x9xf32, #tpu.memory_space<vmem>>, vector<64x9xf32>
    %cst_14 = arith.constant dense<0.000000e+00> : vector<8x9xf32>
    %16 = tpu.matmul %14, %15, %cst_14 {dimension_numbers = #tpu.dot_dimension_numbers<[1], [0], [0], [1], [0, 0, 1, 1], [], []>, precision = #tpu.contract_precision<fp32>} : vector<8x64xf32>, vector<64x9xf32>, vector<8x9xf32> -> vector<8x9xf32>
    %c0_15 = arith.constant 0 : index
    %c0_16 = arith.constant 0 : index
    %17 = vector.load %arg7[%c0_15, %c0_16] : memref<1x9xf32, #tpu.memory_space<vmem>>, vector<1x9xf32>
    %18 = vector.broadcast %17 : vector<1x9xf32> to vector<8x9xf32>
    %19 = arith.addf %16, %18 : vector<8x9xf32>
    %c0_17 = arith.constant 0 : index
    %c0_18 = arith.constant 0 : index
    %20 = vector.load %arg8[%c0_17, %c0_18] : memref<8x9xf32, #tpu.memory_space<vmem>>, vector<8x9xf32>
    tpu.vector_store %arg8[%c0_17, %c0_18], %19 {strides = array<i32>} : memref<8x9xf32, #tpu.memory_space<vmem>>, vector<8x9xf32>,
    return
  }
  func.func @transform_0(%arg0: i32) -> (i32, i32) {
    %c0_i32 = arith.constant 0 : i32
    %c0_i32_0 = arith.constant 0 : i32
    return %arg0, %c0_i32 : i32, i32
  }
  func.func @transform_1(%arg0: i32) -> (i32, i32) {
    %c0_i32 = arith.constant 0 : i32
    %c0_i32_0 = arith.constant 0 : i32
    %c0_i32_1 = arith.constant 0 : i32
    return %c0_i32, %c0_i32_0 : i32, i32
  }
  func.func @transform_2(%arg0: i32) -> (i32, i32) {
    %c0_i32 = arith.constant 0 : i32
    %c0_i32_0 = arith.constant 0 : i32
    %c0_i32_1 = arith.constant 0 : i32
    return %c0_i32, %c0_i32_0 : i32, i32
  }
  func.func @transform_3(%arg0: i32) -> (i32, i32) {
    %c0_i32 = arith.constant 0 : i32
    %c0_i32_0 = arith.constant 0 : i32
    %c0_i32_1 = arith.constant 0 : i32
    return %c0_i32, %c0_i32_0 : i32, i32
  }
  func.func @transform_4(%arg0: i32) -> (i32, i32) {
    %c0_i32 = arith.constant 0 : i32
    %c0_i32_0 = arith.constant 0 : i32
    %c0_i32_1 = arith.constant 0 : i32
    return %c0_i32, %c0_i32_0 : i32, i32
  }
  func.func @transform_5(%arg0: i32) -> (i32, i32) {
    %c0_i32 = arith.constant 0 : i32
    %c0_i32_0 = arith.constant 0 : i32
    %c0_i32_1 = arith.constant 0 : i32
    return %c0_i32, %c0_i32_0 : i32, i32
  }
  func.func @transform_6(%arg0: i32) -> (i32, i32) {
    %c0_i32 = arith.constant 0 : i32
    %c0_i32_0 = arith.constant 0 : i32
    %c0_i32_1 = arith.constant 0 : i32
    return %c0_i32, %c0_i32_0 : i32, i32
  }
  func.func @transform_7(%arg0: i32) -> (i32, i32) {
    %c0_i32 = arith.constant 0 : i32
    %c0_i32_0 = arith.constant 0 : i32
    return %arg0, %c0_i32 : i32, i32
  }
}

</mosaic_0001>

<llo_original>
// kernel: tpu_custom_call.1
$region0: #{tpu_custom_call.1}
  #allocation0 [shape = 'u32[]', space=smem, size = 0x4, offset = 0x4, fixed_abs, tag = 'smem constant byte address 0x4 - core index']
  #allocation1 [shape = 'u32[144,128]{1,0:T(1,128)}', space=vmem, size = 0x12000, scoped, tag = 'internal scratch']
  %s0 = inlined_call_operand.vmem [shape: f32[8,9], index: 0, kind: input, shape index: {}]
  %s1 = inlined_call_operand.vmem [shape: f32[9,128], index: 1, kind: input, shape index: {}]
  %s2 = inlined_call_operand.vmem [shape: f32[1,128], index: 2, kind: input, shape index: {}]
  %s3 = inlined_call_operand.vmem [shape: f32[128,64], index: 3, kind: input, shape index: {}]
  %s4 = inlined_call_operand.vmem [shape: f32[1,64], index: 4, kind: input, shape index: {}]
  %s5 = inlined_call_operand.vmem [shape: f32[64,9], index: 5, kind: input, shape index: {}]
  %s6 = inlined_call_operand.vmem [shape: f32[1,9], index: 6, kind: input, shape index: {}]
  %s7 = inlined_call_operand.hbm [shape: f32[8,9], index: 7, kind: output, shape index: {}]
  %s8 = sld [smem:[#allocation0]]
  $region38: #{tpu_custom_call.1} parent=0
    _
  %s10 = ssub.s32 1, %s8
  %s11 = scalar_select 0, %s10, %s8
  $region1: #{tpu_custom_call.1} parent=0
    #allocation2 [shape = 'u8[4096]{0}', space=vmem, size = 0x1000, scoped, tag = 'output window, operand 0, single buffered']
    #allocation3 [shape = 's32[1]{0}', space=sflag, size = 0x4, scoped, tag = 'scoped memory for tpu_custom_call.1']
    %12 = vsyncpa [#allocation3], 0
    // Predicated region
    $region2: #{tpu_custom_call.1} parent=1 // pred_check
      _
    $region3: #{tpu_custom_call.1} parent=1 // pred_check_branch
      %14 = sbr.rel (0) target = $region5
    $region4: #{tpu_custom_call.1} parent=1 // pred_region
      _
    $region5: #{tpu_custom_call.1} parent=1 // pred_fallthru
      _
    // Predicated region
    $region6: #{tpu_custom_call.1} parent=1 // pred_check
      _
    $region7: #{tpu_custom_call.1} parent=1 // pred_check_branch
      %16 = sbr.rel (0) target = $region9
    $region8: #{tpu_custom_call.1} parent=1 // pred_region
      _
    $region9: #{tpu_custom_call.1} parent=1 // pred_fallthru
      _
    // Predicated region
    $region10: #{tpu_custom_call.1} parent=1 // pred_check
      _
    $region11: #{tpu_custom_call.1} parent=1 // pred_check_branch
      %18 = sbr.rel (0) target = $region13
    $region12: #{tpu_custom_call.1} parent=1 // pred_region
      _
    $region13: #{tpu_custom_call.1} parent=1 // pred_fallthru
      _
    // Predicated region
    $region14: #{tpu_custom_call.1} parent=1 // pred_check
      _
    $region15: #{tpu_custom_call.1} parent=1 // pred_check_branch
      %20 = sbr.rel (0) target = $region17
    $region16: #{tpu_custom_call.1} parent=1 // pred_region
      _
    $region17: #{tpu_custom_call.1} parent=1 // pred_fallthru
      _
    // Predicated region
    $region18: #{tpu_custom_call.1} parent=1 // pred_check
      _
    $region19: #{tpu_custom_call.1} parent=1 // pred_check_branch
      %22 = sbr.rel (0) target = $region21
    $region20: #{tpu_custom_call.1} parent=1 // pred_region
      _
    $region21: #{tpu_custom_call.1} parent=1 // pred_fallthru
      _
    // Predicated region
    $region22: #{tpu_custom_call.1} parent=1 // pred_check
      _
    $region23: #{tpu_custom_call.1} parent=1 // pred_check_branch
      %24 = sbr.rel (0) target = $region25
    $region24: #{tpu_custom_call.1} parent=1 // pred_region
      _
    $region25: #{tpu_custom_call.1} parent=1 // pred_fallthru
      _
    // Predicated region
    $region26: #{tpu_custom_call.1} parent=1 // pred_check
      _
    $region27: #{tpu_custom_call.1} parent=1 // pred_check_branch
      %26 = sbr.rel (0) target = $region29
    $region28: #{tpu_custom_call.1} parent=1 // pred_region
      _
    $region29: #{tpu_custom_call.1} parent=1 // pred_fallthru
      _
    %v27 = vld [vmem:[%s0] sm:$0xff]
    %v28 = vld [vmem:[%s1] sm:$0xff]
    %v29 = vld [vmem:[%s1 + $0x8] sm:$0x1]
    %v30 = vld [vmem:[%s2] sm:$0x1]
    %v32 = vlaneseq
    %v33 = vshrl.u32 %v32, 7
    %v34 = vsub.s32 0, %v33
    %v35 = vrot.slane %v30, %v34
    %vm37 = vcmask 72704
    %v39 = vsel %vm37, %v27, 0
    %vm41 = vcmask 1040384
    %v43 = vsel %vm41, %v29, 0
    %45 = vmatprep.subr.mxu0 0.0
    %46 = vmatpush1.msra.mxu0 0.0
    %47 = vmatprep.subr.mxu0 0.0
    %48 = vmatpush1.msra.mxu0 0.0
    %49 = vmatprep.subr.mxu0 0.0
    %50 = vmatpush1.msra.mxu0 0.0
    %51 = vmatprep.subr.mxu0 0.0
    %52 = vmatpush1.msra.mxu0 0.0
    %53 = vmatprep.subr.mxu0 0.0
    %54 = vmatpush1.msra.mxu0 0.0
    %55 = vmatprep.subr.mxu0 0.0
    %56 = vmatpush1.msra.mxu0 0.0
    %57 = vmatprep.subr.mxu0 0.0
    %58 = vmatpush1.msra.mxu0 0.0
    %59 = vmatprep.subr.mxu0 0.0
    %60 = vmatpush1.msra.mxu0 0.0
    %61 = vmatprep.subr.mxu0 0.0
    %62 = vmatpush1.msra.mxu0 0.0
    %63 = vmatprep.subr.mxu0 0.0
    %64 = vmatpush1.msra.mxu0 0.0
    %65 = vmatprep.subr.mxu0 0.0
    %66 = vmatpush1.msra.mxu0 0.0
    %67 = vmatprep.subr.mxu0 0.0
    %68 = vmatpush1.msra.mxu0 0.0
    %69 = vmatprep.subr.mxu0 0.0
    %70 = vmatpush1.msra.mxu0 0.0
    %71 = vmatprep.subr.mxu0 0.0
    %72 = vmatpush1.msra.mxu0 0.0
    %73 = vmatprep.subr.mxu0 0.0
    %v74 = vand.u32 %v43, 4294901760
    %75 = vmatpush1.msra.mxu0 %v74
    %76 = vmatprep.subr.mxu0 0.0
    %v77 = vand.u32 %v28, 4294901760
    %78 = vmatpush1.msra.mxu0 %v77
    %79 = vmatprep.subr.mxu0 0.0
    %80 = vmatpush2.msra.mxu0 0.0
    %81 = vmatprep.subr.mxu0 0.0
    %82 = vmatpush2.msra.mxu0 0.0
    %83 = vmatprep.subr.mxu0 0.0
    %84 = vmatpush2.msra.mxu0 0.0
    %85 = vmatprep.subr.mxu0 0.0
    %86 = vmatpush2.msra.mxu0 0.0
    %87 = vmatprep.subr.mxu0 0.0
    %88 = vmatpush2.msra.mxu0 0.0
    %89 = vmatprep.subr.mxu0 0.0
    %90 = vmatpush2.msra.mxu0 0.0
    %91 = vmatprep.subr.mxu0 0.0
    %92 = vmatpush2.msra.mxu0 0.0
    %93 = vmatprep.subr.mxu0 0.0
    %94 = vmatpush2.msra.mxu0 0.0
    %95 = vmatprep.subr.mxu0 0.0
    %96 = vmatpush2.msra.mxu0 0.0
    %97 = vmatprep.subr.mxu0 0.0
    %98 = vmatpush2.msra.mxu0 0.0
    %99 = vmatprep.subr.mxu0 0.0
    %100 = vmatpush2.msra.mxu0 0.0
    %101 = vmatprep.subr.mxu0 0.0
    %102 = vmatpush2.msra.mxu0 0.0
    %103 = vmatprep.subr.mxu0 0.0
    %104 = vmatpush2.msra.mxu0 0.0
    %105 = vmatprep.subr.mxu0 0.0
    %106 = vmatpush2.msra.mxu0 0.0
    %107 = vmatprep.subr.mxu0 0.0
    %108 = vmatpush2.msra.mxu0 0.0
    %109 = vmatprep.subr.mxu0 0.0
    %110 = vmatpush2.msra.mxu0 0.0
    %111 = vmatprep.mubr.f32.mxu0 0.0
    %v112 = vand.u32 %v39, 4294901760
    %v113 = vsub.f32 %v39, %v112
    %v114 = vand.u32 %v113, 4294901760
    %v115 = vsub.f32 %v113, %v114
    %v116 = vand.u32 %v115, 4294901760
    %117 = vmatmul.mubr.f32.gmra.mxu0 %v116
    %v118 = vpop.f32.mrf.mxu0
    %v119 = vadd.f32 %v35, %v118
    %v120 = vpop.f32.mrf.mxu0
    %121 = vdwg.mxu0
    %122 = vmatprep.subr.mxu0 0.0
    %123 = vmatpush1.msra.mxu0 0.0
    %124 = vmatprep.subr.mxu0 0.0
    %125 = vmatpush1.msra.mxu0 0.0
    %126 = vmatprep.subr.mxu0 0.0
    %127 = vmatpush1.msra.mxu0 0.0
    %128 = vmatprep.subr.mxu0 0.0
    %129 = vmatpush1.msra.mxu0 0.0
    %130 = vmatprep.subr.mxu0 0.0
    %131 = vmatpush1.msra.mxu0 0.0
    %132 = vmatprep.subr.mxu0 0.0
    %133 = vmatpush1.msra.mxu0 0.0
    %134 = vmatprep.subr.mxu0 0.0
    %135 = vmatpush1.msra.mxu0 0.0
    %136 = vmatprep.subr.mxu0 0.0
    %137 = vmatpush1.msra.mxu0 0.0
    %138 = vmatprep.subr.mxu0 0.0
    %139 = vmatpush1.msra.mxu0 0.0
    %140 = vmatprep.subr.mxu0 0.0
    %141 = vmatpush1.msra.mxu0 0.0
    %142 = vmatprep.subr.mxu0 0.0
    %143 = vmatpush1.msra.mxu0 0.0
    %144 = vmatprep.subr.mxu0 0.0
    %145 = vmatpush1.msra.mxu0 0.0
    %146 = vmatprep.subr.mxu0 0.0
    %147 = vmatpush1.msra.mxu0 0.0
    %148 = vmatprep.subr.mxu0 0.0
    %149 = vmatpush1.msra.mxu0 0.0
    %150 = vmatprep.subr.mxu0 0.0
    %v151 = vand.u32 %v43, 4294901760
    %v152 = vsub.f32 %v43, %v151
    %v153 = vand.u32 %v152, 4294901760
    %v154 = vsub.f32 %v152, %v153
    %v155 = vand.u32 %v154, 4294901760
    %156 = vmatpush1.msra.mxu0 %v155
    %157 = vmatprep.subr.mxu0 0.0
    %v158 = vand.u32 %v28, 4294901760
    %v159 = vsub.f32 %v28, %v158
    %v160 = vand.u32 %v159, 4294901760
    %v161 = vsub.f32 %v159, %v160
    %v162 = vand.u32 %v161, 4294901760
    %163 = vmatpush1.msra.mxu0 %v162
    %164 = vmatprep.subr.mxu0 0.0
    %165 = vmatpush2.msra.mxu0 0.0
    %166 = vmatprep.subr.mxu0 0.0
    %167 = vmatpush2.msra.mxu0 0.0
    %168 = vmatprep.subr.mxu0 0.0
    %169 = vmatpush2.msra.mxu0 0.0
    %170 = vmatprep.subr.mxu0 0.0
    %171 = vmatpush2.msra.mxu0 0.0
    %172 = vmatprep.subr.mxu0 0.0
    %173 = vmatpush2.msra.mxu0 0.0
    %174 = vmatprep.subr.mxu0 0.0
    %175 = vmatpush2.msra.mxu0 0.0
    %176 = vmatprep.subr.mxu0 0.0
    %177 = vmatpush2.msra.mxu0 0.0
    %178 = vmatprep.subr.mxu0 0.0
    %179 = vmatpush2.msra.mxu0 0.0
    %180 = vmatprep.subr.mxu0 0.0
    %181 = vmatpush2.msra.mxu0 0.0
    %182 = vmatprep.subr.mxu0 0.0
    %183 = vmatpush2.msra.mxu0 0.0
    %184 = vmatprep.subr.mxu0 0.0
    %185 = vmatpush2.msra.mxu0 0.0
    %186 = vmatprep.subr.mxu0 0.0
    %187 = vmatpush2.msra.mxu0 0.0
    %188 = vmatprep.subr.mxu0 0.0
    %189 = vmatpush2.msra.mxu0 0.0
    %190 = vmatprep.subr.mxu0 0.0
    %191 = vmatpush2.msra.mxu0 0.0
    %192 = vmatprep.subr.mxu0 0.0
    %193 = vmatpush2.msra.mxu0 0.0
    %194 = vmatprep.subr.mxu0 0.0
    %195 = vmatpush2.msra.mxu0 0.0
    %196 = vmatprep.mubr.f32.mxu0 0.0
    %v197 = vand.u32 %v39, 4294901760
    %198 = vmatmul.mubr.f32.gmra.mxu0 %v197
    %v199 = vpop.f32.mrf.mxu0
    %v200 = vadd.f32 %v119, %v199
    %v201 = vpop.f32.mrf.mxu0
    %202 = vdwg.mxu0
    %203 = vmatprep.subr.mxu0 0.0
    %204 = vmatpush1.msra.mxu0 0.0
    %205 = vmatprep.subr.mxu0 0.0
    %206 = vmatpush1.msra.mxu0 0.0
    %207 = vmatprep.subr.mxu0 0.0
    %208 = vmatpush1.msra.mxu0 0.0
    %209 = vmatprep.subr.mxu0 0.0
    %210 = vmatpush1.msra.mxu0 0.0
    %211 = vmatprep.subr.mxu0 0.0
    %212 = vmatpush1.msra.mxu0 0.0
    %213 = vmatprep.subr.mxu0 0.0
    %214 = vmatpush1.msra.mxu0 0.0
    %215 = vmatprep.subr.mxu0 0.0
    %216 = vmatpush1.msra.mxu0 0.0
    %217 = vmatprep.subr.mxu0 0.0
    %218 = vmatpush1.msra.mxu0 0.0
    %219 = vmatprep.subr.mxu0 0.0
    %220 = vmatpush1.msra.mxu0 0.0
    %221 = vmatprep.subr.mxu0 0.0
    %222 = vmatpush1.msra.mxu0 0.0
    %223 = vmatprep.subr.mxu0 0.0
    %224 = vmatpush1.msra.mxu0 0.0
    %225 = vmatprep.subr.mxu0 0.0
    %226 = vmatpush1.msra.mxu0 0.0
    %227 = vmatprep.subr.mxu0 0.0
    %228 = vmatpush1.msra.mxu0 0.0
    %229 = vmatprep.subr.mxu0 0.0
    %230 = vmatpush1.msra.mxu0 0.0
    %231 = vmatprep.subr.mxu0 0.0
    %v232 = vand.u32 %v43, 4294901760
    %v233 = vsub.f32 %v43, %v232
    %234 = vmatpush1.msra.mxu0 %v233
    %235 = vmatprep.subr.mxu0 0.0
    %v236 = vand.u32 %v28, 4294901760
    %v237 = vsub.f32 %v28, %v236
    %238 = vmatpush1.msra.mxu0 %v237
    %239 = vmatprep.subr.mxu0 0.0
    %240 = vmatpush2.msra.mxu0 0.0
    %241 = vmatprep.subr.mxu0 0.0
    %242 = vmatpush2.msra.mxu0 0.0
    %243 = vmatprep.subr.mxu0 0.0
    %244 = vmatpush2.msra.mxu0 0.0
    %245 = vmatprep.subr.mxu0 0.0
    %246 = vmatpush2.msra.mxu0 0.0
    %247 = vmatprep.subr.mxu0 0.0
    %248 = vmatpush2.msra.mxu0 0.0
    %249 = vmatprep.subr.mxu0 0.0
    %250 = vmatpush2.msra.mxu0 0.0
    %251 = vmatprep.subr.mxu0 0.0
    %252 = vmatpush2.msra.mxu0 0.0
    %253 = vmatprep.subr.mxu0 0.0
    %254 = vmatpush2.msra.mxu0 0.0
    %255 = vmatprep.subr.mxu0 0.0
    %256 = vmatpush2.msra.mxu0 0.0
    %257 = vmatprep.subr.mxu0 0.0
    %258 = vmatpush2.msra.mxu0 0.0
    %259 = vmatprep.subr.mxu0 0.0
    %260 = vmatpush2.msra.mxu0 0.0
    %261 = vmatprep.subr.mxu0 0.0
    %262 = vmatpush2.msra.mxu0 0.0
    %263 = vmatprep.subr.mxu0 0.0
    %264 = vmatpush2.msra.mxu0 0.0
    %265 = vmatprep.subr.mxu0 0.0
    %266 = vmatpush2.msra.mxu0 0.0
    %267 = vmatprep.subr.mxu0 0.0
    %268 = vmatpush2.msra.mxu0 0.0
    %269 = vmatprep.subr.mxu0 0.0
    %270 = vmatpush2.msra.mxu0 0.0
    %271 = vmatprep.mubr.f32.mxu0 0.0
    %v272 = vand.u32 %v39, 4294901760
    %v273 = vsub.f32 %v39, %v272
    %274 = vmatmul.mubr.f32.gmra.mxu0 %v273
    %v275 = vpop.f32.mrf.mxu0
    %v276 = vadd.f32 %v200, %v275
    %v277 = vpop.f32.mrf.mxu0
    %278 = vdwg.mxu0
    %279 = vmatprep.subr.mxu0 0.0
    %280 = vmatpush1.msra.mxu0 0.0
    %281 = vmatprep.subr.mxu0 0.0
    %282 = vmatpush1.msra.mxu0 0.0
    %283 = vmatprep.subr.mxu0 0.0
    %284 = vmatpush1.msra.mxu0 0.0
    %285 = vmatprep.subr.mxu0 0.0
    %286 = vmatpush1.msra.mxu0 0.0
    %287 = vmatprep.subr.mxu0 0.0
    %288 = vmatpush1.msra.mxu0 0.0
    %289 = vmatprep.subr.mxu0 0.0
    %290 = vmatpush1.msra.mxu0 0.0
    %291 = vmatprep.subr.mxu0 0.0
    %292 = vmatpush1.msra.mxu0 0.0
    %293 = vmatprep.subr.mxu0 0.0
    %294 = vmatpush1.msra.mxu0 0.0
    %295 = vmatprep.subr.mxu0 0.0
    %296 = vmatpush1.msra.mxu0 0.0
    %297 = vmatprep.subr.mxu0 0.0
    %298 = vmatpush1.msra.mxu0 0.0
    %299 = vmatprep.subr.mxu0 0.0
    %300 = vmatpush1.msra.mxu0 0.0
    %301 = vmatprep.subr.mxu0 0.0
    %302 = vmatpush1.msra.mxu0 0.0
    %303 = vmatprep.subr.mxu0 0.0
    %304 = vmatpush1.msra.mxu0 0.0
    %305 = vmatprep.subr.mxu0 0.0
    %306 = vmatpush1.msra.mxu0 0.0
    %307 = vmatprep.subr.mxu0 0.0
    %v308 = vand.u32 %v43, 4294901760
    %309 = vmatpush1.msra.mxu0 %v308
    %310 = vmatprep.subr.mxu0 0.0
    %v311 = vand.u32 %v28, 4294901760
    %312 = vmatpush1.msra.mxu0 %v311
    %313 = vmatprep.subr.mxu0 0.0
    %314 = vmatpush2.msra.mxu0 0.0
    %315 = vmatprep.subr.mxu0 0.0
    %316 = vmatpush2.msra.mxu0 0.0
    %317 = vmatprep.subr.mxu0 0.0
    %318 = vmatpush2.msra.mxu0 0.0
    %319 = vmatprep.subr.mxu0 0.0
    %320 = vmatpush2.msra.mxu0 0.0
    %321 = vmatprep.subr.mxu0 0.0
    %322 = vmatpush2.msra.mxu0 0.0
    %323 = vmatprep.subr.mxu0 0.0
    %324 = vmatpush2.msra.mxu0 0.0
    %325 = vmatprep.subr.mxu0 0.0
    %326 = vmatpush2.msra.mxu0 0.0
    %327 = vmatprep.subr.mxu0 0.0
    %328 = vmatpush2.msra.mxu0 0.0
    %329 = vmatprep.subr.mxu0 0.0
    %330 = vmatpush2.msra.mxu0 0.0
    %331 = vmatprep.subr.mxu0 0.0
    %332 = vmatpush2.msra.mxu0 0.0
    %333 = vmatprep.subr.mxu0 0.0
    %334 = vmatpush2.msra.mxu0 0.0
    %335 = vmatprep.subr.mxu0 0.0
    %336 = vmatpush2.msra.mxu0 0.0
    %337 = vmatprep.subr.mxu0 0.0
    %338 = vmatpush2.msra.mxu0 0.0
    %339 = vmatprep.subr.mxu0 0.0
    %340 = vmatpush2.msra.mxu0 0.0
    %341 = vmatprep.subr.mxu0 0.0
    %342 = vmatpush2.msra.mxu0 0.0
    %343 = vmatprep.subr.mxu0 0.0
    %344 = vmatpush2.msra.mxu0 0.0
    %345 = vmatprep.mubr.f32.mxu0 0.0
    %v346 = vand.u32 %v39, 4294901760
    %v347 = vsub.f32 %v39, %v346
    %v348 = vand.u32 %v347, 4294901760
    %349 = vmatmul.mubr.f32.gmra.mxu0 %v348
    %v350 = vpop.f32.mrf.mxu0
    %v351 = vadd.f32 %v276, %v350
    %v352 = vpop.f32.mrf.mxu0
    %353 = vdwg.mxu0
    %354 = vmatprep.subr.mxu0 0.0
    %355 = vmatpush1.msra.mxu0 0.0
    %356 = vmatprep.subr.mxu0 0.0
    %357 = vmatpush1.msra.mxu0 0.0
    %358 = vmatprep.subr.mxu0 0.0
    %359 = vmatpush1.msra.mxu0 0.0
    %360 = vmatprep.subr.mxu0 0.0
    %361 = vmatpush1.msra.mxu0 0.0
    %362 = vmatprep.subr.mxu0 0.0
    %363 = vmatpush1.msra.mxu0 0.0
    %364 = vmatprep.subr.mxu0 0.0
    %365 = vmatpush1.msra.mxu0 0.0
    %366 = vmatprep.subr.mxu0 0.0
    %367 = vmatpush1.msra.mxu0 0.0
    %368 = vmatprep.subr.mxu0 0.0
    %369 = vmatpush1.msra.mxu0 0.0
    %370 = vmatprep.subr.mxu0 0.0
    %371 = vmatpush1.msra.mxu0 0.0
    %372 = vmatprep.subr.mxu0 0.0
    %373 = vmatpush1.msra.mxu0 0.0
    %374 = vmatprep.subr.mxu0 0.0
    %375 = vmatpush1.msra.mxu0 0.0
    %376 = vmatprep.subr.mxu0 0.0
    %377 = vmatpush1.msra.mxu0 0.0
    %378 = vmatprep.subr.mxu0 0.0
    %379 = vmatpush1.msra.mxu0 0.0
    %380 = vmatprep.subr.mxu0 0.0
    %381 = vmatpush1.msra.mxu0 0.0
    %382 = vmatprep.subr.mxu0 0.0
    %v383 = vand.u32 %v43, 4294901760
    %v384 = vsub.f32 %v43, %v383
    %v385 = vand.u32 %v384, 4294901760
    %386 = vmatpush1.msra.mxu0 %v385
    %387 = vmatprep.subr.mxu0 0.0
    %v388 = vand.u32 %v28, 4294901760
    %v389 = vsub.f32 %v28, %v388
    %v390 = vand.u32 %v389, 4294901760
    %391 = vmatpush1.msra.mxu0 %v390
    %392 = vmatprep.subr.mxu0 0.0
    %393 = vmatpush2.msra.mxu0 0.0
    %394 = vmatprep.subr.mxu0 0.0
    %395 = vmatpush2.msra.mxu0 0.0
    %396 = vmatprep.subr.mxu0 0.0
    %397 = vmatpush2.msra.mxu0 0.0
    %398 = vmatprep.subr.mxu0 0.0
    %399 = vmatpush2.msra.mxu0 0.0
    %400 = vmatprep.subr.mxu0 0.0
    %401 = vmatpush2.msra.mxu0 0.0
    %402 = vmatprep.subr.mxu0 0.0
    %403 = vmatpush2.msra.mxu0 0.0
    %404 = vmatprep.subr.mxu0 0.0
    %405 = vmatpush2.msra.mxu0 0.0
    %406 = vmatprep.subr.mxu0 0.0
    %407 = vmatpush2.msra.mxu0 0.0
    %408 = vmatprep.subr.mxu0 0.0
    %409 = vmatpush2.msra.mxu0 0.0
    %410 = vmatprep.subr.mxu0 0.0
    %411 = vmatpush2.msra.mxu0 0.0
    %412 = vmatprep.subr.mxu0 0.0
    %413 = vmatpush2.msra.mxu0 0.0
    %414 = vmatprep.subr.mxu0 0.0
    %415 = vmatpush2.msra.mxu0 0.0
    %416 = vmatprep.subr.mxu0 0.0
    %417 = vmatpush2.msra.mxu0 0.0
    %418 = vmatprep.subr.mxu0 0.0
    %419 = vmatpush2.msra.mxu0 0.0
    %420 = vmatprep.subr.mxu0 0.0
    %421 = vmatpush2.msra.mxu0 0.0
    %422 = vmatprep.subr.mxu0 0.0
    %423 = vmatpush2.msra.mxu0 0.0
    %424 = vmatprep.mubr.f32.mxu0 0.0
    %v425 = vand.u32 %v39, 4294901760
    %426 = vmatmul.mubr.f32.gmra.mxu0 %v425
    %v427 = vpop.f32.mrf.mxu0
    %v428 = vadd.f32 %v351, %v427
    %v429 = vpop.f32.mrf.mxu0
    %430 = vdwg.mxu0
    %431 = vmatprep.subr.mxu0 0.0
    %432 = vmatpush1.msra.mxu0 0.0
    %433 = vmatprep.subr.mxu0 0.0
    %434 = vmatpush1.msra.mxu0 0.0
    %435 = vmatprep.subr.mxu0 0.0
    %436 = vmatpush1.msra.mxu0 0.0
    %437 = vmatprep.subr.mxu0 0.0
    %438 = vmatpush1.msra.mxu0 0.0
    %439 = vmatprep.subr.mxu0 0.0
    %440 = vmatpush1.msra.mxu0 0.0
    %441 = vmatprep.subr.mxu0 0.0
    %442 = vmatpush1.msra.mxu0 0.0
    %443 = vmatprep.subr.mxu0 0.0
    %444 = vmatpush1.msra.mxu0 0.0
    %445 = vmatprep.subr.mxu0 0.0
    %446 = vmatpush1.msra.mxu0 0.0
    %447 = vmatprep.subr.mxu0 0.0
    %448 = vmatpush1.msra.mxu0 0.0
    %449 = vmatprep.subr.mxu0 0.0
    %450 = vmatpush1.msra.mxu0 0.0
    %451 = vmatprep.subr.mxu0 0.0
    %452 = vmatpush1.msra.mxu0 0.0
    %453 = vmatprep.subr.mxu0 0.0
    %454 = vmatpush1.msra.mxu0 0.0
    %455 = vmatprep.subr.mxu0 0.0
    %456 = vmatpush1.msra.mxu0 0.0
    %457 = vmatprep.subr.mxu0 0.0
    %458 = vmatpush1.msra.mxu0 0.0
    %459 = vmatprep.subr.mxu0 0.0
    %v460 = vand.u32 %v43, 4294901760
    %461 = vmatpush1.msra.mxu0 %v460
    %462 = vmatprep.subr.mxu0 0.0
    %v463 = vand.u32 %v28, 4294901760
    %464 = vmatpush1.msra.mxu0 %v463
    %465 = vmatprep.subr.mxu0 0.0
    %466 = vmatpush2.msra.mxu0 0.0
    %467 = vmatprep.subr.mxu0 0.0
    %468 = vmatpush2.msra.mxu0 0.0
    %469 = vmatprep.subr.mxu0 0.0
    %470 = vmatpush2.msra.mxu0 0.0
    %471 = vmatprep.subr.mxu0 0.0
    %472 = vmatpush2.msra.mxu0 0.0
    %473 = vmatprep.subr.mxu0 0.0
    %474 = vmatpush2.msra.mxu0 0.0
    %475 = vmatprep.subr.mxu0 0.0
    %476 = vmatpush2.msra.mxu0 0.0
    %477 = vmatprep.subr.mxu0 0.0
    %478 = vmatpush2.msra.mxu0 0.0
    %479 = vmatprep.subr.mxu0 0.0
    %480 = vmatpush2.msra.mxu0 0.0
    %481 = vmatprep.subr.mxu0 0.0
    %482 = vmatpush2.msra.mxu0 0.0
    %483 = vmatprep.subr.mxu0 0.0
    %484 = vmatpush2.msra.mxu0 0.0
    %485 = vmatprep.subr.mxu0 0.0
    %486 = vmatpush2.msra.mxu0 0.0
    %487 = vmatprep.subr.mxu0 0.0
    %488 = vmatpush2.msra.mxu0 0.0
    %489 = vmatprep.subr.mxu0 0.0
    %490 = vmatpush2.msra.mxu0 0.0
    %491 = vmatprep.subr.mxu0 0.0
    %492 = vmatpush2.msra.mxu0 0.0
    %493 = vmatprep.subr.mxu0 0.0
    %494 = vmatpush2.msra.mxu0 0.0
    %495 = vmatprep.subr.mxu0 0.0
    %496 = vmatpush2.msra.mxu0 0.0
    %497 = vmatprep.mubr.f32.mxu0 0.0
    %v498 = vand.u32 %v39, 4294901760
    %499 = vmatmul.mubr.f32.gmra.mxu0 %v498
    %v500 = vpop.f32.mrf.mxu0
    %v501 = vadd.f32 %v428, %v500
    %v502 = vpop.f32.mrf.mxu0
    %503 = vdwg.mxu0
    %v504 = vmax.f32 %v501, 0.0
    %v505 = vld [vmem:[%s3] sm:$0xff]
    %v506 = vld [vmem:[%s3 + $0x8] sm:$0xff]
    %v507 = vld [vmem:[%s3 + $0x10] sm:$0xff]
    %v508 = vld [vmem:[%s3 + $0x18] sm:$0xff]
    %v509 = vld [vmem:[%s3 + $0x20] sm:$0xff]
    %v510 = vld [vmem:[%s3 + $0x28] sm:$0xff]
    %v511 = vld [vmem:[%s3 + $0x30] sm:$0xff]
    %v512 = vld [vmem:[%s3 + $0x38] sm:$0xff]
    %v513 = vld [vmem:[%s3 + $0x40] sm:$0xff]
    %v514 = vld [vmem:[%s3 + $0x48] sm:$0xff]
    %v515 = vld [vmem:[%s3 + $0x50] sm:$0xff]
    %v516 = vld [vmem:[%s3 + $0x58] sm:$0xff]
    %v517 = vld [vmem:[%s3 + $0x60] sm:$0xff]
    %v518 = vld [vmem:[%s3 + $0x68] sm:$0xff]
    %v519 = vld [vmem:[%s3 + $0x70] sm:$0xff]
    %v520 = vld [vmem:[%s3 + $0x78] sm:$0xff]
    %v521 = vld [vmem:[%s4] sm:$0x1]
    %v523 = vlaneseq
    %v524 = vshrl.u32 %v523, 7
    %v525 = vsub.s32 0, %v524
    %v526 = vrot.slane %v521, %v525
    %528 = vmatprep.subr.mxu0 0.0
    %v529 = vand.u32 %v520, 4294901760
    %530 = vmatpush1.msra.mxu0 %v529
    %531 = vmatprep.subr.mxu0 0.0
    %v532 = vand.u32 %v519, 4294901760
    %533 = vmatpush1.msra.mxu0 %v532
    %534 = vmatprep.subr.mxu0 0.0
    %v535 = vand.u32 %v518, 4294901760
    %536 = vmatpush1.msra.mxu0 %v535
    %537 = vmatprep.subr.mxu0 0.0
    %v538 = vand.u32 %v517, 4294901760
    %539 = vmatpush1.msra.mxu0 %v538
    %540 = vmatprep.subr.mxu0 0.0
    %v541 = vand.u32 %v516, 4294901760
    %542 = vmatpush1.msra.mxu0 %v541
    %543 = vmatprep.subr.mxu0 0.0
    %v544 = vand.u32 %v515, 4294901760
    %545 = vmatpush1.msra.mxu0 %v544
    %546 = vmatprep.subr.mxu0 0.0
    %v547 = vand.u32 %v514, 4294901760
    %548 = vmatpush1.msra.mxu0 %v547
    %549 = vmatprep.subr.mxu0 0.0
    %v550 = vand.u32 %v513, 4294901760
    %551 = vmatpush1.msra.mxu0 %v550
    %552 = vmatprep.subr.mxu0 0.0
    %v553 = vand.u32 %v512, 4294901760
    %554 = vmatpush1.msra.mxu0 %v553
    %555 = vmatprep.subr.mxu0 0.0
    %v556 = vand.u32 %v511, 4294901760
    %557 = vmatpush1.msra.mxu0 %v556
    %558 = vmatprep.subr.mxu0 0.0
    %v559 = vand.u32 %v510, 4294901760
    %560 = vmatpush1.msra.mxu0 %v559
    %561 = vmatprep.subr.mxu0 0.0
    %v562 = vand.u32 %v509, 4294901760
    %563 = vmatpush1.msra.mxu0 %v562
    %564 = vmatprep.subr.mxu0 0.0
    %v565 = vand.u32 %v508, 4294901760
    %566 = vmatpush1.msra.mxu0 %v565
    %567 = vmatprep.subr.mxu0 0.0
    %v568 = vand.u32 %v507, 4294901760
    %569 = vmatpush1.msra.mxu0 %v568
    %570 = vmatprep.subr.mxu0 0.0
    %v571 = vand.u32 %v506, 4294901760
    %572 = vmatpush1.msra.mxu0 %v571
    %573 = vmatprep.subr.mxu0 0.0
    %v574 = vand.u32 %v505, 4294901760
    %575 = vmatpush1.msra.mxu0 %v574
    %576 = vmatprep.subr.mxu0 0.0
    %577 = vmatpush2.msra.mxu0 0.0
    %578 = vmatprep.subr.mxu0 0.0
    %579 = vmatpush2.msra.mxu0 0.0
    %580 = vmatprep.subr.mxu0 0.0
    %581 = vmatpush2.msra.mxu0 0.0
    %582 = vmatprep.subr.mxu0 0.0
    %583 = vmatpush2.msra.mxu0 0.0
    %584 = vmatprep.subr.mxu0 0.0
    %585 = vmatpush2.msra.mxu0 0.0
    %586 = vmatprep.subr.mxu0 0.0
    %587 = vmatpush2.msra.mxu0 0.0
    %588 = vmatprep.subr.mxu0 0.0
    %589 = vmatpush2.msra.mxu0 0.0
    %590 = vmatprep.subr.mxu0 0.0
    %591 = vmatpush2.msra.mxu0 0.0
    %592 = vmatprep.subr.mxu0 0.0
    %593 = vmatpush2.msra.mxu0 0.0
    %594 = vmatprep.subr.mxu0 0.0
    %595 = vmatpush2.msra.mxu0 0.0
    %596 = vmatprep.subr.mxu0 0.0
    %597 = vmatpush2.msra.mxu0 0.0
    %598 = vmatprep.subr.mxu0 0.0
    %599 = vmatpush2.msra.mxu0 0.0
    %600 = vmatprep.subr.mxu0 0.0
    %601 = vmatpush2.msra.mxu0 0.0
    %602 = vmatprep.subr.mxu0 0.0
    %603 = vmatpush2.msra.mxu0 0.0
    %604 = vmatprep.subr.mxu0 0.0
    %605 = vmatpush2.msra.mxu0 0.0
    %606 = vmatprep.subr.mxu0 0.0
    %607 = vmatpush2.msra.mxu0 0.0
    %608 = vmatprep.mubr.f32.mxu0 0.0
    %v609 = vand.u32 %v504, 4294901760
    %v610 = vsub.f32 %v504, %v609
    %v611 = vand.u32 %v610, 4294901760
    %v612 = vsub.f32 %v610, %v611
    %v613 = vand.u32 %v612, 4294901760
    %614 = vmatmul.mubr.f32.gmra.mxu0 %v613
    %v615 = vpop.f32.mrf.mxu0
    %v616 = vadd.f32 %v526, %v615
    %v617 = vpop.f32.mrf.mxu0
    %618 = vdwg.mxu0
    %619 = vmatprep.subr.mxu0 0.0
    %v620 = vand.u32 %v520, 4294901760
    %v621 = vsub.f32 %v520, %v620
    %v622 = vand.u32 %v621, 4294901760
    %v623 = vsub.f32 %v621, %v622
    %v624 = vand.u32 %v623, 4294901760
    %625 = vmatpush1.msra.mxu0 %v624
    %626 = vmatprep.subr.mxu0 0.0
    %v627 = vand.u32 %v519, 4294901760
    %v628 = vsub.f32 %v519, %v627
    %v629 = vand.u32 %v628, 4294901760
    %v630 = vsub.f32 %v628, %v629
    %v631 = vand.u32 %v630, 4294901760
    %632 = vmatpush1.msra.mxu0 %v631
    %633 = vmatprep.subr.mxu0 0.0
    %v634 = vand.u32 %v518, 4294901760
    %v635 = vsub.f32 %v518, %v634
    %v636 = vand.u32 %v635, 4294901760
    %v637 = vsub.f32 %v635, %v636
    %v638 = vand.u32 %v637, 4294901760
    %639 = vmatpush1.msra.mxu0 %v638
    %640 = vmatprep.subr.mxu0 0.0
    %v641 = vand.u32 %v517, 4294901760
    %v642 = vsub.f32 %v517, %v641
    %v643 = vand.u32 %v642, 4294901760
    %v644 = vsub.f32 %v642, %v643
    %v645 = vand.u32 %v644, 4294901760
    %646 = vmatpush1.msra.mxu0 %v645
    %647 = vmatprep.subr.mxu0 0.0
    %v648 = vand.u32 %v516, 4294901760
    %v649 = vsub.f32 %v516, %v648
    %v650 = vand.u32 %v649, 4294901760
    %v651 = vsub.f32 %v649, %v650
    %v652 = vand.u32 %v651, 4294901760
    %653 = vmatpush1.msra.mxu0 %v652
    %654 = vmatprep.subr.mxu0 0.0
    %v655 = vand.u32 %v515, 4294901760
    %v656 = vsub.f32 %v515, %v655
    %v657 = vand.u32 %v656, 4294901760
    %v658 = vsub.f32 %v656, %v657
    %v659 = vand.u32 %v658, 4294901760
    %660 = vmatpush1.msra.mxu0 %v659
    %661 = vmatprep.subr.mxu0 0.0
    %v662 = vand.u32 %v514, 4294901760
    %v663 = vsub.f32 %v514, %v662
    %v664 = vand.u32 %v663, 4294901760
    %v665 = vsub.f32 %v663, %v664
    %v666 = vand.u32 %v665, 4294901760
    %667 = vmatpush1.msra.mxu0 %v666
    %668 = vmatprep.subr.mxu0 0.0
    %v669 = vand.u32 %v513, 4294901760
    %v670 = vsub.f32 %v513, %v669
    %v671 = vand.u32 %v670, 4294901760
    %v672 = vsub.f32 %v670, %v671
    %v673 = vand.u32 %v672, 4294901760
    %674 = vmatpush1.msra.mxu0 %v673
    %675 = vmatprep.subr.mxu0 0.0
    %v676 = vand.u32 %v512, 4294901760
    %v677 = vsub.f32 %v512, %v676
    %v678 = vand.u32 %v677, 4294901760
    %v679 = vsub.f32 %v677, %v678
    %v680 = vand.u32 %v679, 4294901760
    %681 = vmatpush1.msra.mxu0 %v680
    %682 = vmatprep.subr.mxu0 0.0
    %v683 = vand.u32 %v511, 4294901760
    %v684 = vsub.f32 %v511, %v683
    %v685 = vand.u32 %v684, 4294901760
    %v686 = vsub.f32 %v684, %v685
    %v687 = vand.u32 %v686, 4294901760
    %688 = vmatpush1.msra.mxu0 %v687
    %689 = vmatprep.subr.mxu0 0.0
    %v690 = vand.u32 %v510, 4294901760
    %v691 = vsub.f32 %v510, %v690
    %v692 = vand.u32 %v691, 4294901760
    %v693 = vsub.f32 %v691, %v692
    %v694 = vand.u32 %v693, 4294901760
    %695 = vmatpush1.msra.mxu0 %v694
    %696 = vmatprep.subr.mxu0 0.0
    %v697 = vand.u32 %v509, 4294901760
    %v698 = vsub.f32 %v509, %v697
    %v699 = vand.u32 %v698, 4294901760
    %v700 = vsub.f32 %v698, %v699
    %v701 = vand.u32 %v700, 4294901760
    %702 = vmatpush1.msra.mxu0 %v701
    %703 = vmatprep.subr.mxu0 0.0
    %v704 = vand.u32 %v508, 4294901760
    %v705 = vsub.f32 %v508, %v704
    %v706 = vand.u32 %v705, 4294901760
    %v707 = vsub.f32 %v705, %v706
    %v708 = vand.u32 %v707, 4294901760
    %709 = vmatpush1.msra.mxu0 %v708
    %710 = vmatprep.subr.mxu0 0.0
    %v711 = vand.u32 %v507, 4294901760
    %v712 = vsub.f32 %v507, %v711
    %v713 = vand.u32 %v712, 4294901760
    %v714 = vsub.f32 %v712, %v713
    %v715 = vand.u32 %v714, 4294901760
    %716 = vmatpush1.msra.mxu0 %v715
    %717 = vmatprep.subr.mxu0 0.0
    %v718 = vand.u32 %v506, 4294901760
    %v719 = vsub.f32 %v506, %v718
    %v720 = vand.u32 %v719, 4294901760
    %v721 = vsub.f32 %v719, %v720
    %v722 = vand.u32 %v721, 4294901760
    %723 = vmatpush1.msra.mxu0 %v722
    %724 = vmatprep.subr.mxu0 0.0
    %v725 = vand.u32 %v505, 4294901760
    %v726 = vsub.f32 %v505, %v725
    %v727 = vand.u32 %v726, 4294901760
    %v728 = vsub.f32 %v726, %v727
    %v729 = vand.u32 %v728, 4294901760
    %730 = vmatpush1.msra.mxu0 %v729
    %731 = vmatprep.subr.mxu0 0.0
    %732 = vmatpush2.msra.mxu0 0.0
    %733 = vmatprep.subr.mxu0 0.0
    %734 = vmatpush2.msra.mxu0 0.0
    %735 = vmatprep.subr.mxu0 0.0
    %736 = vmatpush2.msra.mxu0 0.0
    %737 = vmatprep.subr.mxu0 0.0
    %738 = vmatpush2.msra.mxu0 0.0
    %739 = vmatprep.subr.mxu0 0.0
    %740 = vmatpush2.msra.mxu0 0.0
    %741 = vmatprep.subr.mxu0 0.0
    %742 = vmatpush2.msra.mxu0 0.0
    %743 = vmatprep.subr.mxu0 0.0
    %744 = vmatpush2.msra.mxu0 0.0
    %745 = vmatprep.subr.mxu0 0.0
    %746 = vmatpush2.msra.mxu0 0.0
    %747 = vmatprep.subr.mxu0 0.0
    %748 = vmatpush2.msra.mxu0 0.0
    %749 = vmatprep.subr.mxu0 0.0
    %750 = vmatpush2.msra.mxu0 0.0
    %751 = vmatprep.subr.mxu0 0.0
    %752 = vmatpush2.msra.mxu0 0.0
    %753 = vmatprep.subr.mxu0 0.0
    %754 = vmatpush2.msra.mxu0 0.0
    %755 = vmatprep.subr.mxu0 0.0
    %756 = vmatpush2.msra.mxu0 0.0
    %757 = vmatprep.subr.mxu0 0.0
    %758 = vmatpush2.msra.mxu0 0.0
    %759 = vmatprep.subr.mxu0 0.0
    %760 = vmatpush2.msra.mxu0 0.0
    %761 = vmatprep.subr.mxu0 0.0
    %762 = vmatpush2.msra.mxu0 0.0
    %763 = vmatprep.mubr.f32.mxu0 0.0
    %v764 = vand.u32 %v504, 4294901760
    %765 = vmatmul.mubr.f32.gmra.mxu0 %v764
    %v766 = vpop.f32.mrf.mxu0
    %v767 = vadd.f32 %v616, %v766
    %v768 = vpop.f32.mrf.mxu0
    %769 = vdwg.mxu0
    %770 = vmatprep.subr.mxu0 0.0
    %v771 = vand.u32 %v520, 4294901760
    %v772 = vsub.f32 %v520, %v771
    %773 = vmatpush1.msra.mxu0 %v772
    %774 = vmatprep.subr.mxu0 0.0
    %v775 = vand.u32 %v519, 4294901760
    %v776 = vsub.f32 %v519, %v775
    %777 = vmatpush1.msra.mxu0 %v776
    %778 = vmatprep.subr.mxu0 0.0
    %v779 = vand.u32 %v518, 4294901760
    %v780 = vsub.f32 %v518, %v779
    %781 = vmatpush1.msra.mxu0 %v780
    %782 = vmatprep.subr.mxu0 0.0
    %v783 = vand.u32 %v517, 4294901760
    %v784 = vsub.f32 %v517, %v783
    %785 = vmatpush1.msra.mxu0 %v784
    %786 = vmatprep.subr.mxu0 0.0
    %v787 = vand.u32 %v516, 4294901760
    %v788 = vsub.f32 %v516, %v787
    %789 = vmatpush1.msra.mxu0 %v788
    %790 = vmatprep.subr.mxu0 0.0
    %v791 = vand.u32 %v515, 4294901760
    %v792 = vsub.f32 %v515, %v791
    %793 = vmatpush1.msra.mxu0 %v792
    %794 = vmatprep.subr.mxu0 0.0
    %v795 = vand.u32 %v514, 4294901760
    %v796 = vsub.f32 %v514, %v795
    %797 = vmatpush1.msra.mxu0 %v796
    %798 = vmatprep.subr.mxu0 0.0
    %v799 = vand.u32 %v513, 4294901760
    %v800 = vsub.f32 %v513, %v799
    %801 = vmatpush1.msra.mxu0 %v800
    %802 = vmatprep.subr.mxu0 0.0
    %v803 = vand.u32 %v512, 4294901760
    %v804 = vsub.f32 %v512, %v803
    %805 = vmatpush1.msra.mxu0 %v804
    %806 = vmatprep.subr.mxu0 0.0
    %v807 = vand.u32 %v511, 4294901760
    %v808 = vsub.f32 %v511, %v807
    %809 = vmatpush1.msra.mxu0 %v808
    %810 = vmatprep.subr.mxu0 0.0
    %v811 = vand.u32 %v510, 4294901760
    %v812 = vsub.f32 %v510, %v811
    %813 = vmatpush1.msra.mxu0 %v812
    %814 = vmatprep.subr.mxu0 0.0
    %v815 = vand.u32 %v509, 4294901760
    %v816 = vsub.f32 %v509, %v815
    %817 = vmatpush1.msra.mxu0 %v816
    %818 = vmatprep.subr.mxu0 0.0
    %v819 = vand.u32 %v508, 4294901760
    %v820 = vsub.f32 %v508, %v819
    %821 = vmatpush1.msra.mxu0 %v820
    %822 = vmatprep.subr.mxu0 0.0
    %v823 = vand.u32 %v507, 4294901760
    %v824 = vsub.f32 %v507, %v823
    %825 = vmatpush1.msra.mxu0 %v824
    %826 = vmatprep.subr.mxu0 0.0
    %v827 = vand.u32 %v506, 4294901760
    %v828 = vsub.f32 %v506, %v827
    %829 = vmatpush1.msra.mxu0 %v828
    %830 = vmatprep.subr.mxu0 0.0
    %v831 = vand.u32 %v505, 4294901760
    %v832 = vsub.f32 %v505, %v831
    %833 = vmatpush1.msra.mxu0 %v832
    %834 = vmatprep.subr.mxu0 0.0
    %835 = vmatpush2.msra.mxu0 0.0
    %836 = vmatprep.subr.mxu0 0.0
    %837 = vmatpush2.msra.mxu0 0.0
    %838 = vmatprep.subr.mxu0 0.0
    %839 = vmatpush2.msra.mxu0 0.0
    %840 = vmatprep.subr.mxu0 0.0
    %841 = vmatpush2.msra.mxu0 0.0
    %842 = vmatprep.subr.mxu0 0.0
    %843 = vmatpush2.msra.mxu0 0.0
    %844 = vmatprep.subr.mxu0 0.0
    %845 = vmatpush2.msra.mxu0 0.0
    %846 = vmatprep.subr.mxu0 0.0
    %847 = vmatpush2.msra.mxu0 0.0
    %848 = vmatprep.subr.mxu0 0.0
    %849 = vmatpush2.msra.mxu0 0.0
    %850 = vmatprep.subr.mxu0 0.0
    %851 = vmatpush2.msra.mxu0 0.0
    %852 = vmatprep.subr.mxu0 0.0
    %853 = vmatpush2.msra.mxu0 0.0
    %854 = vmatprep.subr.mxu0 0.0
    %855 = vmatpush2.msra.mxu0 0.0
    %856 = vmatprep.subr.mxu0 0.0
    %857 = vmatpush2.msra.mxu0 0.0
    %858 = vmatprep.subr.mxu0 0.0
    %859 = vmatpush2.msra.mxu0 0.0
    %860 = vmatprep.subr.mxu0 0.0
    %861 = vmatpush2.msra.mxu0 0.0
    %862 = vmatprep.subr.mxu0 0.0
    %863 = vmatpush2.msra.mxu0 0.0
    %864 = vmatprep.subr.mxu0 0.0
    %865 = vmatpush2.msra.mxu0 0.0
    %866 = vmatprep.mubr.f32.mxu0 0.0
    %v867 = vand.u32 %v504, 4294901760
    %v868 = vsub.f32 %v504, %v867
    %869 = vmatmul.mubr.f32.gmra.mxu0 %v868
    %v870 = vpop.f32.mrf.mxu0
    %v871 = vadd.f32 %v767, %v870
    %v872 = vpop.f32.mrf.mxu0
    %873 = vdwg.mxu0
    %874 = vmatprep.subr.mxu0 0.0
    %v875 = vand.u32 %v520, 4294901760
    %876 = vmatpush1.msra.mxu0 %v875
    %877 = vmatprep.subr.mxu0 0.0
    %v878 = vand.u32 %v519, 4294901760
    %879 = vmatpush1.msra.mxu0 %v878
    %880 = vmatprep.subr.mxu0 0.0
    %v881 = vand.u32 %v518, 4294901760
    %882 = vmatpush1.msra.mxu0 %v881
    %883 = vmatprep.subr.mxu0 0.0
    %v884 = vand.u32 %v517, 4294901760
    %885 = vmatpush1.msra.mxu0 %v884
    %886 = vmatprep.subr.mxu0 0.0
    %v887 = vand.u32 %v516, 4294901760
    %888 = vmatpush1.msra.mxu0 %v887
    %889 = vmatprep.subr.mxu0 0.0
    %v890 = vand.u32 %v515, 4294901760
    %891 = vmatpush1.msra.mxu0 %v890
    %892 = vmatprep.subr.mxu0 0.0
    %v893 = vand.u32 %v514, 4294901760
    %894 = vmatpush1.msra.mxu0 %v893
    %895 = vmatprep.subr.mxu0 0.0
    %v896 = vand.u32 %v513, 4294901760
    %897 = vmatpush1.msra.mxu0 %v896
    %898 = vmatprep.subr.mxu0 0.0
    %v899 = vand.u32 %v512, 4294901760
    %900 = vmatpush1.msra.mxu0 %v899
    %901 = vmatprep.subr.mxu0 0.0
    %v902 = vand.u32 %v511, 4294901760
    %903 = vmatpush1.msra.mxu0 %v902
    %904 = vmatprep.subr.mxu0 0.0
    %v905 = vand.u32 %v510, 4294901760
    %906 = vmatpush1.msra.mxu0 %v905
    %907 = vmatprep.subr.mxu0 0.0
    %v908 = vand.u32 %v509, 4294901760
    %909 = vmatpush1.msra.mxu0 %v908
    %910 = vmatprep.subr.mxu0 0.0
    %v911 = vand.u32 %v508, 4294901760
    %912 = vmatpush1.msra.mxu0 %v911
    %913 = vmatprep.subr.mxu0 0.0
    %v914 = vand.u32 %v507, 4294901760
    %915 = vmatpush1.msra.mxu0 %v914
    %916 = vmatprep.subr.mxu0 0.0
    %v917 = vand.u32 %v506, 4294901760
    %918 = vmatpush1.msra.mxu0 %v917
    %919 = vmatprep.subr.mxu0 0.0
    %v920 = vand.u32 %v505, 4294901760
    %921 = vmatpush1.msra.mxu0 %v920
    %922 = vmatprep.subr.mxu0 0.0
    %923 = vmatpush2.msra.mxu0 0.0
    %924 = vmatprep.subr.mxu0 0.0
    %925 = vmatpush2.msra.mxu0 0.0
    %926 = vmatprep.subr.mxu0 0.0
    %927 = vmatpush2.msra.mxu0 0.0
    %928 = vmatprep.subr.mxu0 0.0
    %929 = vmatpush2.msra.mxu0 0.0
    %930 = vmatprep.subr.mxu0 0.0
    %931 = vmatpush2.msra.mxu0 0.0
    %932 = vmatprep.subr.mxu0 0.0
    %933 = vmatpush2.msra.mxu0 0.0
    %934 = vmatprep.subr.mxu0 0.0
    %935 = vmatpush2.msra.mxu0 0.0
    %936 = vmatprep.subr.mxu0 0.0
    %937 = vmatpush2.msra.mxu0 0.0
    %938 = vmatprep.subr.mxu0 0.0
    %939 = vmatpush2.msra.mxu0 0.0
    %940 = vmatprep.subr.mxu0 0.0
    %941 = vmatpush2.msra.mxu0 0.0
    %942 = vmatprep.subr.mxu0 0.0
    %943 = vmatpush2.msra.mxu0 0.0
    %944 = vmatprep.subr.mxu0 0.0
    %945 = vmatpush2.msra.mxu0 0.0
    %946 = vmatprep.subr.mxu0 0.0
    %947 = vmatpush2.msra.mxu0 0.0
    %948 = vmatprep.subr.mxu0 0.0
    %949 = vmatpush2.msra.mxu0 0.0
    %950 = vmatprep.subr.mxu0 0.0
    %951 = vmatpush2.msra.mxu0 0.0
    %952 = vmatprep.subr.mxu0 0.0
    %953 = vmatpush2.msra.mxu0 0.0
    %954 = vmatprep.mubr.f32.mxu0 0.0
    %v955 = vand.u32 %v504, 4294901760
    %v956 = vsub.f32 %v504, %v955
    %v957 = vand.u32 %v956, 4294901760
    %958 = vmatmul.mubr.f32.gmra.mxu0 %v957
    %v959 = vpop.f32.mrf.mxu0
    %v960 = vadd.f32 %v871, %v959
    %v961 = vpop.f32.mrf.mxu0
    %962 = vdwg.mxu0
    %963 = vmatprep.subr.mxu0 0.0
    %v964 = vand.u32 %v520, 4294901760
    %v965 = vsub.f32 %v520, %v964
    %v966 = vand.u32 %v965, 4294901760
    %967 = vmatpush1.msra.mxu0 %v966
    %968 = vmatprep.subr.mxu0 0.0
    %v969 = vand.u32 %v519, 4294901760
    %v970 = vsub.f32 %v519, %v969
    %v971 = vand.u32 %v970, 4294901760
    %972 = vmatpush1.msra.mxu0 %v971
    %973 = vmatprep.subr.mxu0 0.0
    %v974 = vand.u32 %v518, 4294901760
    %v975 = vsub.f32 %v518, %v974
    %v976 = vand.u32 %v975, 4294901760
    %977 = vmatpush1.msra.mxu0 %v976
    %978 = vmatprep.subr.mxu0 0.0
    %v979 = vand.u32 %v517, 4294901760
    %v980 = vsub.f32 %v517, %v979
    %v981 = vand.u32 %v980, 4294901760
    %982 = vmatpush1.msra.mxu0 %v981
    %983 = vmatprep.subr.mxu0 0.0
    %v984 = vand.u32 %v516, 4294901760
    %v985 = vsub.f32 %v516, %v984
    %v986 = vand.u32 %v985, 4294901760
    %987 = vmatpush1.msra.mxu0 %v986
    %988 = vmatprep.subr.mxu0 0.0
    %v989 = vand.u32 %v515, 4294901760
    %v990 = vsub.f32 %v515, %v989
    %v991 = vand.u32 %v990, 4294901760
    %992 = vmatpush1.msra.mxu0 %v991
    %993 = vmatprep.subr.mxu0 0.0
    %v994 = vand.u32 %v514, 4294901760
    %v995 = vsub.f32 %v514, %v994
    %v996 = vand.u32 %v995, 4294901760
    %997 = vmatpush1.msra.mxu0 %v996
    %998 = vmatprep.subr.mxu0 0.0
    %v999 = vand.u32 %v513, 4294901760
    %v1000 = vsub.f32 %v513, %v999
    %v1001 = vand.u32 %v1000, 4294901760
    %1002 = vmatpush1.msra.mxu0 %v1001
    %1003 = vmatprep.subr.mxu0 0.0
    %v1004 = vand.u32 %v512, 4294901760
    %v1005 = vsub.f32 %v512, %v1004
    %v1006 = vand.u32 %v1005, 4294901760
    %1007 = vmatpush1.msra.mxu0 %v1006
    %1008 = vmatprep.subr.mxu0 0.0
    %v1009 = vand.u32 %v511, 4294901760
    %v1010 = vsub.f32 %v511, %v1009
    %v1011 = vand.u32 %v1010, 4294901760
    %1012 = vmatpush1.msra.mxu0 %v1011
    %1013 = vmatprep.subr.mxu0 0.0
    %v1014 = vand.u32 %v510, 4294901760
    %v1015 = vsub.f32 %v510, %v1014
    %v1016 = vand.u32 %v1015, 4294901760
    %1017 = vmatpush1.msra.mxu0 %v1016
    %1018 = vmatprep.subr.mxu0 0.0
    %v1019 = vand.u32 %v509, 4294901760
    %v1020 = vsub.f32 %v509, %v1019
    %v1021 = vand.u32 %v1020, 4294901760
    %1022 = vmatpush1.msra.mxu0 %v1021
    %1023 = vmatprep.subr.mxu0 0.0
    %v1024 = vand.u32 %v508, 4294901760
    %v1025 = vsub.f32 %v508, %v1024
    %v1026 = vand.u32 %v1025, 4294901760
    %1027 = vmatpush1.msra.mxu0 %v1026
    %1028 = vmatprep.subr.mxu0 0.0
    %v1029 = vand.u32 %v507, 4294901760
    %v1030 = vsub.f32 %v507, %v1029
    %v1031 = vand.u32 %v1030, 4294901760
    %1032 = vmatpush1.msra.mxu0 %v1031
    %1033 = vmatprep.subr.mxu0 0.0
    %v1034 = vand.u32 %v506, 4294901760
    %v1035 = vsub.f32 %v506, %v1034
    %v1036 = vand.u32 %v1035, 4294901760
    %1037 = vmatpush1.msra.mxu0 %v1036
    %1038 = vmatprep.subr.mxu0 0.0
    %v1039 = vand.u32 %v505, 4294901760
    %v1040 = vsub.f32 %v505, %v1039
    %v1041 = vand.u32 %v1040, 4294901760
    %1042 = vmatpush1.msra.mxu0 %v1041
    %1043 = vmatprep.subr.mxu0 0.0
    %1044 = vmatpush2.msra.mxu0 0.0
    %1045 = vmatprep.subr.mxu0 0.0
    %1046 = vmatpush2.msra.mxu0 0.0
    %1047 = vmatprep.subr.mxu0 0.0
    %1048 = vmatpush2.msra.mxu0 0.0
    %1049 = vmatprep.subr.mxu0 0.0
    %1050 = vmatpush2.msra.mxu0 0.0
    %1051 = vmatprep.subr.mxu0 0.0
    %1052 = vmatpush2.msra.mxu0 0.0
    %1053 = vmatprep.subr.mxu0 0.0
    %1054 = vmatpush2.msra.mxu0 0.0
    %1055 = vmatprep.subr.mxu0 0.0
    %1056 = vmatpush2.msra.mxu0 0.0
    %1057 = vmatprep.subr.mxu0 0.0
    %1058 = vmatpush2.msra.mxu0 0.0
    %1059 = vmatprep.subr.mxu0 0.0
    %1060 = vmatpush2.msra.mxu0 0.0
    %1061 = vmatprep.subr.mxu0 0.0
    %1062 = vmatpush2.msra.mxu0 0.0
    %1063 = vmatprep.subr.mxu0 0.0
    %1064 = vmatpush2.msra.mxu0 0.0
    %1065 = vmatprep.subr.mxu0 0.0
    %1066 = vmatpush2.msra.mxu0 0.0
    %1067 = vmatprep.subr.mxu0 0.0
    %1068 = vmatpush2.msra.mxu0 0.0
    %1069 = vmatprep.subr.mxu0 0.0
    %1070 = vmatpush2.msra.mxu0 0.0
    %1071 = vmatprep.subr.mxu0 0.0
    %1072 = vmatpush2.msra.mxu0 0.0
    %1073 = vmatprep.subr.mxu0 0.0
    %1074 = vmatpush2.msra.mxu0 0.0
    %1075 = vmatprep.mubr.f32.mxu0 0.0
    %v1076 = vand.u32 %v504, 4294901760
    %1077 = vmatmul.mubr.f32.gmra.mxu0 %v1076
    %v1078 = vpop.f32.mrf.mxu0
    %v1079 = vadd.f32 %v960, %v1078
    %v1080 = vpop.f32.mrf.mxu0
    %1081 = vdwg.mxu0
    %1082 = vmatprep.subr.mxu0 0.0
    %v1083 = vand.u32 %v520, 4294901760
    %1084 = vmatpush1.msra.mxu0 %v1083
    %1085 = vmatprep.subr.mxu0 0.0
    %v1086 = vand.u32 %v519, 4294901760
    %1087 = vmatpush1.msra.mxu0 %v1086
    %1088 = vmatprep.subr.mxu0 0.0
    %v1089 = vand.u32 %v518, 4294901760
    %1090 = vmatpush1.msra.mxu0 %v1089
    %1091 = vmatprep.subr.mxu0 0.0
    %v1092 = vand.u32 %v517, 4294901760
    %1093 = vmatpush1.msra.mxu0 %v1092
    %1094 = vmatprep.subr.mxu0 0.0
    %v1095 = vand.u32 %v516, 4294901760
    %1096 = vmatpush1.msra.mxu0 %v1095
    %1097 = vmatprep.subr.mxu0 0.0
    %v1098 = vand.u32 %v515, 4294901760
    %1099 = vmatpush1.msra.mxu0 %v1098
    %1100 = vmatprep.subr.mxu0 0.0
    %v1101 = vand.u32 %v514, 4294901760
    %1102 = vmatpush1.msra.mxu0 %v1101
    %1103 = vmatprep.subr.mxu0 0.0
    %v1104 = vand.u32 %v513, 4294901760
    %1105 = vmatpush1.msra.mxu0 %v1104
    %1106 = vmatprep.subr.mxu0 0.0
    %v1107 = vand.u32 %v512, 4294901760
    %1108 = vmatpush1.msra.mxu0 %v1107
    %1109 = vmatprep.subr.mxu0 0.0
    %v1110 = vand.u32 %v511, 4294901760
    %1111 = vmatpush1.msra.mxu0 %v1110
    %1112 = vmatprep.subr.mxu0 0.0
    %v1113 = vand.u32 %v510, 4294901760
    %1114 = vmatpush1.msra.mxu0 %v1113
    %1115 = vmatprep.subr.mxu0 0.0
    %v1116 = vand.u32 %v509, 4294901760
    %1117 = vmatpush1.msra.mxu0 %v1116
    %1118 = vmatprep.subr.mxu0 0.0
    %v1119 = vand.u32 %v508, 4294901760
    %1120 = vmatpush1.msra.mxu0 %v1119
    %1121 = vmatprep.subr.mxu0 0.0
    %v1122 = vand.u32 %v507, 4294901760
    %1123 = vmatpush1.msra.mxu0 %v1122
    %1124 = vmatprep.subr.mxu0 0.0
    %v1125 = vand.u32 %v506, 4294901760
    %1126 = vmatpush1.msra.mxu0 %v1125
    %1127 = vmatprep.subr.mxu0 0.0
    %v1128 = vand.u32 %v505, 4294901760
    %1129 = vmatpush1.msra.mxu0 %v1128
    %1130 = vmatprep.subr.mxu0 0.0
    %1131 = vmatpush2.msra.mxu0 0.0
    %1132 = vmatprep.subr.mxu0 0.0
    %1133 = vmatpush2.msra.mxu0 0.0
    %1134 = vmatprep.subr.mxu0 0.0
    %1135 = vmatpush2.msra.mxu0 0.0
    %1136 = vmatprep.subr.mxu0 0.0
    %1137 = vmatpush2.msra.mxu0 0.0
    %1138 = vmatprep.subr.mxu0 0.0
    %1139 = vmatpush2.msra.mxu0 0.0
    %1140 = vmatprep.subr.mxu0 0.0
    %1141 = vmatpush2.msra.mxu0 0.0
    %1142 = vmatprep.subr.mxu0 0.0
    %1143 = vmatpush2.msra.mxu0 0.0
    %1144 = vmatprep.subr.mxu0 0.0
    %1145 = vmatpush2.msra.mxu0 0.0
    %1146 = vmatprep.subr.mxu0 0.0
    %1147 = vmatpush2.msra.mxu0 0.0
    %1148 = vmatprep.subr.mxu0 0.0
    %1149 = vmatpush2.msra.mxu0 0.0
    %1150 = vmatprep.subr.mxu0 0.0
    %1151 = vmatpush2.msra.mxu0 0.0
    %1152 = vmatprep.subr.mxu0 0.0
    %1153 = vmatpush2.msra.mxu0 0.0
    %1154 = vmatprep.subr.mxu0 0.0
    %1155 = vmatpush2.msra.mxu0 0.0
    %1156 = vmatprep.subr.mxu0 0.0
    %1157 = vmatpush2.msra.mxu0 0.0
    %1158 = vmatprep.subr.mxu0 0.0
    %1159 = vmatpush2.msra.mxu0 0.0
    %1160 = vmatprep.subr.mxu0 0.0
    %1161 = vmatpush2.msra.mxu0 0.0
    %1162 = vmatprep.mubr.f32.mxu0 0.0
    %v1163 = vand.u32 %v504, 4294901760
    %1164 = vmatmul.mubr.f32.gmra.mxu0 %v1163
    %v1165 = vpop.f32.mrf.mxu0
    %v1166 = vadd.f32 %v1079, %v1165
    %v1167 = vpop.f32.mrf.mxu0
    %1168 = vdwg.mxu0
    %v1169 = vmax.f32 %v1166, 0.0
    %v1170 = vld [vmem:[%s5] sm:$0xff]
    %v1171 = vld [vmem:[%s5 + $0x8] sm:$0xff]
    %v1172 = vld [vmem:[%s5 + $0x10] sm:$0xff]
    %v1173 = vld [vmem:[%s5 + $0x18] sm:$0xff]
    %v1174 = vld [vmem:[%s5 + $0x20] sm:$0xff]
    %v1175 = vld [vmem:[%s5 + $0x28] sm:$0xff]
    %v1176 = vld [vmem:[%s5 + $0x30] sm:$0xff]
    %v1177 = vld [vmem:[%s5 + $0x38] sm:$0xff]
    %v1178 = vld [vmem:[%s6] sm:$0x1]
    %v1180 = vlaneseq
    %v1181 = vshrl.u32 %v1180, 7
    %v1182 = vsub.s32 0, %v1181
    %v1183 = vrot.slane %v1178, %v1182
    %vm1185 = vcmask 523264
    %v1187 = vsel %vm1185, %v1169, 0
    %1189 = vmatprep.subr.mxu0 0.0
    %1190 = vmatpush1.msra.mxu0 0.0
    %1191 = vmatprep.subr.mxu0 0.0
    %1192 = vmatpush1.msra.mxu0 0.0
    %1193 = vmatprep.subr.mxu0 0.0
    %1194 = vmatpush1.msra.mxu0 0.0
    %1195 = vmatprep.subr.mxu0 0.0
    %1196 = vmatpush1.msra.mxu0 0.0
    %1197 = vmatprep.subr.mxu0 0.0
    %1198 = vmatpush1.msra.mxu0 0.0
    %1199 = vmatprep.subr.mxu0 0.0
    %1200 = vmatpush1.msra.mxu0 0.0
    %1201 = vmatprep.subr.mxu0 0.0
    %1202 = vmatpush1.msra.mxu0 0.0
    %1203 = vmatprep.subr.mxu0 0.0
    %1204 = vmatpush1.msra.mxu0 0.0
    %1205 = vmatprep.subr.mxu0 0.0
    %v1206 = vand.u32 %v1177, 4294901760
    %1207 = vmatpush1.msra.mxu0 %v1206
    %1208 = vmatprep.subr.mxu0 0.0
    %v1209 = vand.u32 %v1176, 4294901760
    %1210 = vmatpush1.msra.mxu0 %v1209
    %1211 = vmatprep.subr.mxu0 0.0
    %v1212 = vand.u32 %v1175, 4294901760
    %1213 = vmatpush1.msra.mxu0 %v1212
    %1214 = vmatprep.subr.mxu0 0.0
    %v1215 = vand.u32 %v1174, 4294901760
    %1216 = vmatpush1.msra.mxu0 %v1215
    %1217 = vmatprep.subr.mxu0 0.0
    %v1218 = vand.u32 %v1173, 4294901760
    %1219 = vmatpush1.msra.mxu0 %v1218
    %1220 = vmatprep.subr.mxu0 0.0
    %v1221 = vand.u32 %v1172, 4294901760
    %1222 = vmatpush1.msra.mxu0 %v1221
    %1223 = vmatprep.subr.mxu0 0.0
    %v1224 = vand.u32 %v1171, 4294901760
    %1225 = vmatpush1.msra.mxu0 %v1224
    %1226 = vmatprep.subr.mxu0 0.0
    %v1227 = vand.u32 %v1170, 4294901760
    %1228 = vmatpush1.msra.mxu0 %v1227
    %1229 = vmatprep.subr.mxu0 0.0
    %1230 = vmatpush2.msra.mxu0 0.0
    %1231 = vmatprep.subr.mxu0 0.0
    %1232 = vmatpush2.msra.mxu0 0.0
    %1233 = vmatprep.subr.mxu0 0.0
    %1234 = vmatpush2.msra.mxu0 0.0
    %1235 = vmatprep.subr.mxu0 0.0
    %1236 = vmatpush2.msra.mxu0 0.0
    %1237 = vmatprep.subr.mxu0 0.0
    %1238 = vmatpush2.msra.mxu0 0.0
    %1239 = vmatprep.subr.mxu0 0.0
    %1240 = vmatpush2.msra.mxu0 0.0
    %1241 = vmatprep.subr.mxu0 0.0
    %1242 = vmatpush2.msra.mxu0 0.0
    %1243 = vmatprep.subr.mxu0 0.0
    %1244 = vmatpush2.msra.mxu0 0.0
    %1245 = vmatprep.subr.mxu0 0.0
    %1246 = vmatpush2.msra.mxu0 0.0
    %1247 = vmatprep.subr.mxu0 0.0
    %1248 = vmatpush2.msra.mxu0 0.0
    %1249 = vmatprep.subr.mxu0 0.0
    %1250 = vmatpush2.msra.mxu0 0.0
    %1251 = vmatprep.subr.mxu0 0.0
    %1252 = vmatpush2.msra.mxu0 0.0
    %1253 = vmatprep.subr.mxu0 0.0
    %1254 = vmatpush2.msra.mxu0 0.0
    %1255 = vmatprep.subr.mxu0 0.0
    %1256 = vmatpush2.msra.mxu0 0.0
    %1257 = vmatprep.subr.mxu0 0.0
    %1258 = vmatpush2.msra.mxu0 0.0
    %1259 = vmatprep.subr.mxu0 0.0
    %1260 = vmatpush2.msra.mxu0 0.0
    %1261 = vmatprep.mubr.f32.mxu0 0.0
    %v1262 = vand.u32 %v1187, 4294901760
    %v1263 = vsub.f32 %v1187, %v1262
    %v1264 = vand.u32 %v1263, 4294901760
    %v1265 = vsub.f32 %v1263, %v1264
    %v1266 = vand.u32 %v1265, 4294901760
    %1267 = vmatmul.mubr.f32.gmra.mxu0 %v1266
    %v1268 = vpop.f32.mrf.mxu0
    %v1269 = vadd.f32 %v1183, %v1268
    %v1270 = vpop.f32.mrf.mxu0
    %1271 = vdwg.mxu0
    %1272 = vmatprep.subr.mxu0 0.0
    %1273 = vmatpush1.msra.mxu0 0.0
    %1274 = vmatprep.subr.mxu0 0.0
    %1275 = vmatpush1.msra.mxu0 0.0
    %1276 = vmatprep.subr.mxu0 0.0
    %1277 = vmatpush1.msra.mxu0 0.0
    %1278 = vmatprep.subr.mxu0 0.0
    %1279 = vmatpush1.msra.mxu0 0.0
    %1280 = vmatprep.subr.mxu0 0.0
    %1281 = vmatpush1.msra.mxu0 0.0
    %1282 = vmatprep.subr.mxu0 0.0
    %1283 = vmatpush1.msra.mxu0 0.0
    %1284 = vmatprep.subr.mxu0 0.0
    %1285 = vmatpush1.msra.mxu0 0.0
    %1286 = vmatprep.subr.mxu0 0.0
    %1287 = vmatpush1.msra.mxu0 0.0
    %1288 = vmatprep.subr.mxu0 0.0
    %v1289 = vand.u32 %v1177, 4294901760
    %v1290 = vsub.f32 %v1177, %v1289
    %v1291 = vand.u32 %v1290, 4294901760
    %v1292 = vsub.f32 %v1290, %v1291
    %v1293 = vand.u32 %v1292, 4294901760
    %1294 = vmatpush1.msra.mxu0 %v1293
    %1295 = vmatprep.subr.mxu0 0.0
    %v1296 = vand.u32 %v1176, 4294901760
    %v1297 = vsub.f32 %v1176, %v1296
    %v1298 = vand.u32 %v1297, 4294901760
    %v1299 = vsub.f32 %v1297, %v1298
    %v1300 = vand.u32 %v1299, 4294901760
    %1301 = vmatpush1.msra.mxu0 %v1300
    %1302 = vmatprep.subr.mxu0 0.0
    %v1303 = vand.u32 %v1175, 4294901760
    %v1304 = vsub.f32 %v1175, %v1303
    %v1305 = vand.u32 %v1304, 4294901760
    %v1306 = vsub.f32 %v1304, %v1305
    %v1307 = vand.u32 %v1306, 4294901760
    %1308 = vmatpush1.msra.mxu0 %v1307
    %1309 = vmatprep.subr.mxu0 0.0
    %v1310 = vand.u32 %v1174, 4294901760
    %v1311 = vsub.f32 %v1174, %v1310
    %v1312 = vand.u32 %v1311, 4294901760
    %v1313 = vsub.f32 %v1311, %v1312
    %v1314 = vand.u32 %v1313, 4294901760
    %1315 = vmatpush1.msra.mxu0 %v1314
    %1316 = vmatprep.subr.mxu0 0.0
    %v1317 = vand.u32 %v1173, 4294901760
    %v1318 = vsub.f32 %v1173, %v1317
    %v1319 = vand.u32 %v1318, 4294901760
    %v1320 = vsub.f32 %v1318, %v1319
    %v1321 = vand.u32 %v1320, 4294901760
    %1322 = vmatpush1.msra.mxu0 %v1321
    %1323 = vmatprep.subr.mxu0 0.0
    %v1324 = vand.u32 %v1172, 4294901760
    %v1325 = vsub.f32 %v1172, %v1324
    %v1326 = vand.u32 %v1325, 4294901760
    %v1327 = vsub.f32 %v1325, %v1326
    %v1328 = vand.u32 %v1327, 4294901760
    %1329 = vmatpush1.msra.mxu0 %v1328
    %1330 = vmatprep.subr.mxu0 0.0
    %v1331 = vand.u32 %v1171, 4294901760
    %v1332 = vsub.f32 %v1171, %v1331
    %v1333 = vand.u32 %v1332, 4294901760
    %v1334 = vsub.f32 %v1332, %v1333
    %v1335 = vand.u32 %v1334, 4294901760
    %1336 = vmatpush1.msra.mxu0 %v1335
    %1337 = vmatprep.subr.mxu0 0.0
    %v1338 = vand.u32 %v1170, 4294901760
    %v1339 = vsub.f32 %v1170, %v1338
    %v1340 = vand.u32 %v1339, 4294901760
    %v1341 = vsub.f32 %v1339, %v1340
    %v1342 = vand.u32 %v1341, 4294901760
    %1343 = vmatpush1.msra.mxu0 %v1342
    %1344 = vmatprep.subr.mxu0 0.0
    %1345 = vmatpush2.msra.mxu0 0.0
    %1346 = vmatprep.subr.mxu0 0.0
    %1347 = vmatpush2.msra.mxu0 0.0
    %1348 = vmatprep.subr.mxu0 0.0
    %1349 = vmatpush2.msra.mxu0 0.0
    %1350 = vmatprep.subr.mxu0 0.0
    %1351 = vmatpush2.msra.mxu0 0.0
    %1352 = vmatprep.subr.mxu0 0.0
    %1353 = vmatpush2.msra.mxu0 0.0
    %1354 = vmatprep.subr.mxu0 0.0
    %1355 = vmatpush2.msra.mxu0 0.0
    %1356 = vmatprep.subr.mxu0 0.0
    %1357 = vmatpush2.msra.mxu0 0.0
    %1358 = vmatprep.subr.mxu0 0.0
    %1359 = vmatpush2.msra.mxu0 0.0
    %1360 = vmatprep.subr.mxu0 0.0
    %1361 = vmatpush2.msra.mxu0 0.0
    %1362 = vmatprep.subr.mxu0 0.0
    %1363 = vmatpush2.msra.mxu0 0.0
    %1364 = vmatprep.subr.mxu0 0.0
    %1365 = vmatpush2.msra.mxu0 0.0
    %1366 = vmatprep.subr.mxu0 0.0
    %1367 = vmatpush2.msra.mxu0 0.0
    %1368 = vmatprep.subr.mxu0 0.0
    %1369 = vmatpush2.msra.mxu0 0.0
    %1370 = vmatprep.subr.mxu0 0.0
    %1371 = vmatpush2.msra.mxu0 0.0
    %1372 = vmatprep.subr.mxu0 0.0
    %1373 = vmatpush2.msra.mxu0 0.0
    %1374 = vmatprep.subr.mxu0 0.0
    %1375 = vmatpush2.msra.mxu0 0.0
    %1376 = vmatprep.mubr.f32.mxu0 0.0
    %v1377 = vand.u32 %v1187, 4294901760
    %1378 = vmatmul.mubr.f32.gmra.mxu0 %v1377
    %v1379 = vpop.f32.mrf.mxu0
    %v1380 = vadd.f32 %v1269, %v1379
    %v1381 = vpop.f32.mrf.mxu0
    %1382 = vdwg.mxu0
    %1383 = vmatprep.subr.mxu0 0.0
    %1384 = vmatpush1.msra.mxu0 0.0
    %1385 = vmatprep.subr.mxu0 0.0
    %1386 = vmatpush1.msra.mxu0 0.0
    %1387 = vmatprep.subr.mxu0 0.0
    %1388 = vmatpush1.msra.mxu0 0.0
    %1389 = vmatprep.subr.mxu0 0.0
    %1390 = vmatpush1.msra.mxu0 0.0
    %1391 = vmatprep.subr.mxu0 0.0
    %1392 = vmatpush1.msra.mxu0 0.0
    %1393 = vmatprep.subr.mxu0 0.0
    %1394 = vmatpush1.msra.mxu0 0.0
    %1395 = vmatprep.subr.mxu0 0.0
    %1396 = vmatpush1.msra.mxu0 0.0
    %1397 = vmatprep.subr.mxu0 0.0
    %1398 = vmatpush1.msra.mxu0 0.0
    %1399 = vmatprep.subr.mxu0 0.0
    %v1400 = vand.u32 %v1177, 4294901760
    %v1401 = vsub.f32 %v1177, %v1400
    %1402 = vmatpush1.msra.mxu0 %v1401
    %1403 = vmatprep.subr.mxu0 0.0
    %v1404 = vand.u32 %v1176, 4294901760
    %v1405 = vsub.f32 %v1176, %v1404
    %1406 = vmatpush1.msra.mxu0 %v1405
    %1407 = vmatprep.subr.mxu0 0.0
    %v1408 = vand.u32 %v1175, 4294901760
    %v1409 = vsub.f32 %v1175, %v1408
    %1410 = vmatpush1.msra.mxu0 %v1409
    %1411 = vmatprep.subr.mxu0 0.0
    %v1412 = vand.u32 %v1174, 4294901760
    %v1413 = vsub.f32 %v1174, %v1412
    %1414 = vmatpush1.msra.mxu0 %v1413
    %1415 = vmatprep.subr.mxu0 0.0
    %v1416 = vand.u32 %v1173, 4294901760
    %v1417 = vsub.f32 %v1173, %v1416
    %1418 = vmatpush1.msra.mxu0 %v1417
    %1419 = vmatprep.subr.mxu0 0.0
    %v1420 = vand.u32 %v1172, 4294901760
    %v1421 = vsub.f32 %v1172, %v1420
    %1422 = vmatpush1.msra.mxu0 %v1421
    %1423 = vmatprep.subr.mxu0 0.0
    %v1424 = vand.u32 %v1171, 4294901760
    %v1425 = vsub.f32 %v1171, %v1424
    %1426 = vmatpush1.msra.mxu0 %v1425
    %1427 = vmatprep.subr.mxu0 0.0
    %v1428 = vand.u32 %v1170, 4294901760
    %v1429 = vsub.f32 %v1170, %v1428
    %1430 = vmatpush1.msra.mxu0 %v1429
    %1431 = vmatprep.subr.mxu0 0.0
    %1432 = vmatpush2.msra.mxu0 0.0
    %1433 = vmatprep.subr.mxu0 0.0
    %1434 = vmatpush2.msra.mxu0 0.0
    %1435 = vmatprep.subr.mxu0 0.0
    %1436 = vmatpush2.msra.mxu0 0.0
    %1437 = vmatprep.subr.mxu0 0.0
    %1438 = vmatpush2.msra.mxu0 0.0
    %1439 = vmatprep.subr.mxu0 0.0
    %1440 = vmatpush2.msra.mxu0 0.0
    %1441 = vmatprep.subr.mxu0 0.0
    %1442 = vmatpush2.msra.mxu0 0.0
    %1443 = vmatprep.subr.mxu0 0.0
    %1444 = vmatpush2.msra.mxu0 0.0
    %1445 = vmatprep.subr.mxu0 0.0
    %1446 = vmatpush2.msra.mxu0 0.0
    %1447 = vmatprep.subr.mxu0 0.0
    %1448 = vmatpush2.msra.mxu0 0.0
    %1449 = vmatprep.subr.mxu0 0.0
    %1450 = vmatpush2.msra.mxu0 0.0
    %1451 = vmatprep.subr.mxu0 0.0
    %1452 = vmatpush2.msra.mxu0 0.0
    %1453 = vmatprep.subr.mxu0 0.0
    %1454 = vmatpush2.msra.mxu0 0.0
    %1455 = vmatprep.subr.mxu0 0.0
    %1456 = vmatpush2.msra.mxu0 0.0
    %1457 = vmatprep.subr.mxu0 0.0
    %1458 = vmatpush2.msra.mxu0 0.0
    %1459 = vmatprep.subr.mxu0 0.0
    %1460 = vmatpush2.msra.mxu0 0.0
    %1461 = vmatprep.subr.mxu0 0.0
    %1462 = vmatpush2.msra.mxu0 0.0
    %1463 = vmatprep.mubr.f32.mxu0 0.0
    %v1464 = vand.u32 %v1187, 4294901760
    %v1465 = vsub.f32 %v1187, %v1464
    %1466 = vmatmul.mubr.f32.gmra.mxu0 %v1465
    %v1467 = vpop.f32.mrf.mxu0
    %v1468 = vadd.f32 %v1380, %v1467
    %v1469 = vpop.f32.mrf.mxu0
    %1470 = vdwg.mxu0
    %1471 = vmatprep.subr.mxu0 0.0
    %1472 = vmatpush1.msra.mxu0 0.0
    %1473 = vmatprep.subr.mxu0 0.0
    %1474 = vmatpush1.msra.mxu0 0.0
    %1475 = vmatprep.subr.mxu0 0.0
    %1476 = vmatpush1.msra.mxu0 0.0
    %1477 = vmatprep.subr.mxu0 0.0
    %1478 = vmatpush1.msra.mxu0 0.0
    %1479 = vmatprep.subr.mxu0 0.0
    %1480 = vmatpush1.msra.mxu0 0.0
    %1481 = vmatprep.subr.mxu0 0.0
    %1482 = vmatpush1.msra.mxu0 0.0
    %1483 = vmatprep.subr.mxu0 0.0
    %1484 = vmatpush1.msra.mxu0 0.0
    %1485 = vmatprep.subr.mxu0 0.0
    %1486 = vmatpush1.msra.mxu0 0.0
    %1487 = vmatprep.subr.mxu0 0.0
    %v1488 = vand.u32 %v1177, 4294901760
    %1489 = vmatpush1.msra.mxu0 %v1488
    %1490 = vmatprep.subr.mxu0 0.0
    %v1491 = vand.u32 %v1176, 4294901760
    %1492 = vmatpush1.msra.mxu0 %v1491
    %1493 = vmatprep.subr.mxu0 0.0
    %v1494 = vand.u32 %v1175, 4294901760
    %1495 = vmatpush1.msra.mxu0 %v1494
    %1496 = vmatprep.subr.mxu0 0.0
    %v1497 = vand.u32 %v1174, 4294901760
    %1498 = vmatpush1.msra.mxu0 %v1497
    %1499 = vmatprep.subr.mxu0 0.0
    %v1500 = vand.u32 %v1173, 4294901760
    %1501 = vmatpush1.msra.mxu0 %v1500
    %1502 = vmatprep.subr.mxu0 0.0
    %v1503 = vand.u32 %v1172, 4294901760
    %1504 = vmatpush1.msra.mxu0 %v1503
    %1505 = vmatprep.subr.mxu0 0.0
    %v1506 = vand.u32 %v1171, 4294901760
    %1507 = vmatpush1.msra.mxu0 %v1506
    %1508 = vmatprep.subr.mxu0 0.0
    %v1509 = vand.u32 %v1170, 4294901760
    %1510 = vmatpush1.msra.mxu0 %v1509
    %1511 = vmatprep.subr.mxu0 0.0
    %1512 = vmatpush2.msra.mxu0 0.0
    %1513 = vmatprep.subr.mxu0 0.0
    %1514 = vmatpush2.msra.mxu0 0.0
    %1515 = vmatprep.subr.mxu0 0.0
    %1516 = vmatpush2.msra.mxu0 0.0
    %1517 = vmatprep.subr.mxu0 0.0
    %1518 = vmatpush2.msra.mxu0 0.0
    %1519 = vmatprep.subr.mxu0 0.0
    %1520 = vmatpush2.msra.mxu0 0.0
    %1521 = vmatprep.subr.mxu0 0.0
    %1522 = vmatpush2.msra.mxu0 0.0
    %1523 = vmatprep.subr.mxu0 0.0
    %1524 = vmatpush2.msra.mxu0 0.0
    %1525 = vmatprep.subr.mxu0 0.0
    %1526 = vmatpush2.msra.mxu0 0.0
    %1527 = vmatprep.subr.mxu0 0.0
    %1528 = vmatpush2.msra.mxu0 0.0
    %1529 = vmatprep.subr.mxu0 0.0
    %1530 = vmatpush2.msra.mxu0 0.0
    %1531 = vmatprep.subr.mxu0 0.0
    %1532 = vmatpush2.msra.mxu0 0.0
    %1533 = vmatprep.subr.mxu0 0.0
    %1534 = vmatpush2.msra.mxu0 0.0
    %1535 = vmatprep.subr.mxu0 0.0
    %1536 = vmatpush2.msra.mxu0 0.0
    %1537 = vmatprep.subr.mxu0 0.0
    %1538 = vmatpush2.msra.mxu0 0.0
    %1539 = vmatprep.subr.mxu0 0.0
    %1540 = vmatpush2.msra.mxu0 0.0
    %1541 = vmatprep.subr.mxu0 0.0
    %1542 = vmatpush2.msra.mxu0 0.0
    %1543 = vmatprep.mubr.f32.mxu0 0.0
    %v1544 = vand.u32 %v1187, 4294901760
    %v1545 = vsub.f32 %v1187, %v1544
    %v1546 = vand.u32 %v1545, 4294901760
    %1547 = vmatmul.mubr.f32.gmra.mxu0 %v1546
    %v1548 = vpop.f32.mrf.mxu0
    %v1549 = vadd.f32 %v1468, %v1548
    %v1550 = vpop.f32.mrf.mxu0
    %1551 = vdwg.mxu0
    %1552 = vmatprep.subr.mxu0 0.0
    %1553 = vmatpush1.msra.mxu0 0.0
    %1554 = vmatprep.subr.mxu0 0.0
    %1555 = vmatpush1.msra.mxu0 0.0
    %1556 = vmatprep.subr.mxu0 0.0
    %1557 = vmatpush1.msra.mxu0 0.0
    %1558 = vmatprep.subr.mxu0 0.0
    %1559 = vmatpush1.msra.mxu0 0.0
    %1560 = vmatprep.subr.mxu0 0.0
    %1561 = vmatpush1.msra.mxu0 0.0
    %1562 = vmatprep.subr.mxu0 0.0
    %1563 = vmatpush1.msra.mxu0 0.0
    %1564 = vmatprep.subr.mxu0 0.0
    %1565 = vmatpush1.msra.mxu0 0.0
    %1566 = vmatprep.subr.mxu0 0.0
    %1567 = vmatpush1.msra.mxu0 0.0
    %1568 = vmatprep.subr.mxu0 0.0
    %v1569 = vand.u32 %v1177, 4294901760
    %v1570 = vsub.f32 %v1177, %v1569
    %v1571 = vand.u32 %v1570, 4294901760
    %1572 = vmatpush1.msra.mxu0 %v1571
    %1573 = vmatprep.subr.mxu0 0.0
    %v1574 = vand.u32 %v1176, 4294901760
    %v1575 = vsub.f32 %v1176, %v1574
    %v1576 = vand.u32 %v1575, 4294901760
    %1577 = vmatpush1.msra.mxu0 %v1576
    %1578 = vmatprep.subr.mxu0 0.0
    %v1579 = vand.u32 %v1175, 4294901760
    %v1580 = vsub.f32 %v1175, %v1579
    %v1581 = vand.u32 %v1580, 4294901760
    %1582 = vmatpush1.msra.mxu0 %v1581
    %1583 = vmatprep.subr.mxu0 0.0
    %v1584 = vand.u32 %v1174, 4294901760
    %v1585 = vsub.f32 %v1174, %v1584
    %v1586 = vand.u32 %v1585, 4294901760
    %1587 = vmatpush1.msra.mxu0 %v1586
    %1588 = vmatprep.subr.mxu0 0.0
    %v1589 = vand.u32 %v1173, 4294901760
    %v1590 = vsub.f32 %v1173, %v1589
    %v1591 = vand.u32 %v1590, 4294901760
    %1592 = vmatpush1.msra.mxu0 %v1591
    %1593 = vmatprep.subr.mxu0 0.0
    %v1594 = vand.u32 %v1172, 4294901760
    %v1595 = vsub.f32 %v1172, %v1594
    %v1596 = vand.u32 %v1595, 4294901760
    %1597 = vmatpush1.msra.mxu0 %v1596
    %1598 = vmatprep.subr.mxu0 0.0
    %v1599 = vand.u32 %v1171, 4294901760
    %v1600 = vsub.f32 %v1171, %v1599
    %v1601 = vand.u32 %v1600, 4294901760
    %1602 = vmatpush1.msra.mxu0 %v1601
    %1603 = vmatprep.subr.mxu0 0.0
    %v1604 = vand.u32 %v1170, 4294901760
    %v1605 = vsub.f32 %v1170, %v1604
    %v1606 = vand.u32 %v1605, 4294901760
    %1607 = vmatpush1.msra.mxu0 %v1606
    %1608 = vmatprep.subr.mxu0 0.0
    %1609 = vmatpush2.msra.mxu0 0.0
    %1610 = vmatprep.subr.mxu0 0.0
    %1611 = vmatpush2.msra.mxu0 0.0
    %1612 = vmatprep.subr.mxu0 0.0
    %1613 = vmatpush2.msra.mxu0 0.0
    %1614 = vmatprep.subr.mxu0 0.0
    %1615 = vmatpush2.msra.mxu0 0.0
    %1616 = vmatprep.subr.mxu0 0.0
    %1617 = vmatpush2.msra.mxu0 0.0
    %1618 = vmatprep.subr.mxu0 0.0
    %1619 = vmatpush2.msra.mxu0 0.0
    %1620 = vmatprep.subr.mxu0 0.0
    %1621 = vmatpush2.msra.mxu0 0.0
    %1622 = vmatprep.subr.mxu0 0.0
    %1623 = vmatpush2.msra.mxu0 0.0
    %1624 = vmatprep.subr.mxu0 0.0
    %1625 = vmatpush2.msra.mxu0 0.0
    %1626 = vmatprep.subr.mxu0 0.0
    %1627 = vmatpush2.msra.mxu0 0.0
    %1628 = vmatprep.subr.mxu0 0.0
    %1629 = vmatpush2.msra.mxu0 0.0
    %1630 = vmatprep.subr.mxu0 0.0
    %1631 = vmatpush2.msra.mxu0 0.0
    %1632 = vmatprep.subr.mxu0 0.0
    %1633 = vmatpush2.msra.mxu0 0.0
    %1634 = vmatprep.subr.mxu0 0.0
    %1635 = vmatpush2.msra.mxu0 0.0
    %1636 = vmatprep.subr.mxu0 0.0
    %1637 = vmatpush2.msra.mxu0 0.0
    %1638 = vmatprep.subr.mxu0 0.0
    %1639 = vmatpush2.msra.mxu0 0.0
    %1640 = vmatprep.mubr.f32.mxu0 0.0
    %v1641 = vand.u32 %v1187, 4294901760
    %1642 = vmatmul.mubr.f32.gmra.mxu0 %v1641
    %v1643 = vpop.f32.mrf.mxu0
    %v1644 = vadd.f32 %v1549, %v1643
    %v1645 = vpop.f32.mrf.mxu0
    %1646 = vdwg.mxu0
    %1647 = vmatprep.subr.mxu0 0.0
    %1648 = vmatpush1.msra.mxu0 0.0
    %1649 = vmatprep.subr.mxu0 0.0
    %1650 = vmatpush1.msra.mxu0 0.0
    %1651 = vmatprep.subr.mxu0 0.0
    %1652 = vmatpush1.msra.mxu0 0.0
    %1653 = vmatprep.subr.mxu0 0.0
    %1654 = vmatpush1.msra.mxu0 0.0
    %1655 = vmatprep.subr.mxu0 0.0
    %1656 = vmatpush1.msra.mxu0 0.0
    %1657 = vmatprep.subr.mxu0 0.0
    %1658 = vmatpush1.msra.mxu0 0.0
    %1659 = vmatprep.subr.mxu0 0.0
    %1660 = vmatpush1.msra.mxu0 0.0
    %1661 = vmatprep.subr.mxu0 0.0
    %1662 = vmatpush1.msra.mxu0 0.0
    %1663 = vmatprep.subr.mxu0 0.0
    %v1664 = vand.u32 %v1177, 4294901760
    %1665 = vmatpush1.msra.mxu0 %v1664
    %1666 = vmatprep.subr.mxu0 0.0
    %v1667 = vand.u32 %v1176, 4294901760
    %1668 = vmatpush1.msra.mxu0 %v1667
    %1669 = vmatprep.subr.mxu0 0.0
    %v1670 = vand.u32 %v1175, 4294901760
    %1671 = vmatpush1.msra.mxu0 %v1670
    %1672 = vmatprep.subr.mxu0 0.0
    %v1673 = vand.u32 %v1174, 4294901760
    %1674 = vmatpush1.msra.mxu0 %v1673
    %1675 = vmatprep.subr.mxu0 0.0
    %v1676 = vand.u32 %v1173, 4294901760
    %1677 = vmatpush1.msra.mxu0 %v1676
    %1678 = vmatprep.subr.mxu0 0.0
    %v1679 = vand.u32 %v1172, 4294901760
    %1680 = vmatpush1.msra.mxu0 %v1679
    %1681 = vmatprep.subr.mxu0 0.0
    %v1682 = vand.u32 %v1171, 4294901760
    %1683 = vmatpush1.msra.mxu0 %v1682
    %1684 = vmatprep.subr.mxu0 0.0
    %v1685 = vand.u32 %v1170, 4294901760
    %1686 = vmatpush1.msra.mxu0 %v1685
    %1687 = vmatprep.subr.mxu0 0.0
    %1688 = vmatpush2.msra.mxu0 0.0
    %1689 = vmatprep.subr.mxu0 0.0
    %1690 = vmatpush2.msra.mxu0 0.0
    %1691 = vmatprep.subr.mxu0 0.0
    %1692 = vmatpush2.msra.mxu0 0.0
    %1693 = vmatprep.subr.mxu0 0.0
    %1694 = vmatpush2.msra.mxu0 0.0
    %1695 = vmatprep.subr.mxu0 0.0
    %1696 = vmatpush2.msra.mxu0 0.0
    %1697 = vmatprep.subr.mxu0 0.0
    %1698 = vmatpush2.msra.mxu0 0.0
    %1699 = vmatprep.subr.mxu0 0.0
    %1700 = vmatpush2.msra.mxu0 0.0
    %1701 = vmatprep.subr.mxu0 0.0
    %1702 = vmatpush2.msra.mxu0 0.0
    %1703 = vmatprep.subr.mxu0 0.0
    %1704 = vmatpush2.msra.mxu0 0.0
    %1705 = vmatprep.subr.mxu0 0.0
    %1706 = vmatpush2.msra.mxu0 0.0
    %1707 = vmatprep.subr.mxu0 0.0
    %1708 = vmatpush2.msra.mxu0 0.0
    %1709 = vmatprep.subr.mxu0 0.0
    %1710 = vmatpush2.msra.mxu0 0.0
    %1711 = vmatprep.subr.mxu0 0.0
    %1712 = vmatpush2.msra.mxu0 0.0
    %1713 = vmatprep.subr.mxu0 0.0
    %1714 = vmatpush2.msra.mxu0 0.0
    %1715 = vmatprep.subr.mxu0 0.0
    %1716 = vmatpush2.msra.mxu0 0.0
    %1717 = vmatprep.subr.mxu0 0.0
    %1718 = vmatpush2.msra.mxu0 0.0
    %1719 = vmatprep.mubr.f32.mxu0 0.0
    %v1720 = vand.u32 %v1187, 4294901760
    %1721 = vmatmul.mubr.f32.gmra.mxu0 %v1720
    %v1722 = vpop.f32.mrf.mxu0
    %v1723 = vadd.f32 %v1644, %v1722
    %v1724 = vpop.f32.mrf.mxu0
    %1725 = vdwg.mxu0
    %1726 = vst.msk [vmem:[#allocation2] sm:$0xff] %vm37, %v1723
    // Predicated region
    $region30: #{tpu_custom_call.1} parent=1 // pred_check
      _
    $region31: #{tpu_custom_call.1} parent=1 // pred_check_branch
      %1728 = sbr.rel (0) target = $region33
    $region32: #{tpu_custom_call.1} parent=1 // pred_region
      %s1730 = ssub.s32 128, 128
      %1731 = vsyncadd [#allocation3], %s1730
      %s1733 = sshll.u32 [#allocation2], 4
      %s1734 = int_to_ptr.vmem [resolvable:$true] %s1733
      %1736 = dma.vmem_to_hbm [thread:$0]  %s1734, 128, %s7, [#allocation3]
    $region33: #{tpu_custom_call.1} parent=1 // pred_fallthru
      _
    // Predicated region
    $region34: #{tpu_custom_call.1} parent=1 // pred_check
      _
    $region35: #{tpu_custom_call.1} parent=1 // pred_check_branch
      %1738 = sbr.rel (0) target = $region37
    $region36: #{tpu_custom_call.1} parent=1 // pred_region
      %1739 = dma.done [#allocation3], 128
    $region37: #{tpu_custom_call.1} parent=1 // pred_fallthru
      _
    %1740 = vsyncpa [#allocation3], 1

</llo_original>
